<compile_context>
chip_gen: v7x
topology: tpu7x:2x2x1
jax: 0.10.0
libtpu: 0.0.40
codegen_flags: <defaults>
</compile_context>

<pallas_src>
import numpy as np
import jax
import jax.numpy as jnp
from jax.experimental import pallas as pl
from jax.experimental.pallas import tpu as pltpu

L_IN = 42          # input sequence length (so 32 * 9 == 288 after conv2+pool2)
C1, C2 = 16, 32    # conv output channels
L1, L2 = 20, 9     # lengths after pool1 / pool2
HID, OUT = 128, 2


# --------------------------------------------------------------------------- #
# Kernel: whole network, one grid step per batch tile.
# --------------------------------------------------------------------------- #
def cnn_unsw_kernel(x_ref, w1_ref, b1_ref, w2_ref, b2_ref,
                    wf1_ref, bf1_ref, wf2_ref, bf2_ref, o_ref):
    def mm(a, w_ref):                      # MXU matmul, f32 accumulation
        w = w_ref[...]
        return jnp.dot(a.astype(w.dtype), w, preferred_element_type=jnp.float32)

    x = x_ref[...]                                             # (BT, 42)

    # conv1 (1->16, k=3, pad=1) as one banded matmul, + bias + ReLU
    y1 = jnp.maximum(mm(x, w1_ref) + b1_ref[...], 0.0)         # (BT, 42*16)

    # MaxPool1d(k=4, s=2): q1 block j = max over positions j..j+3 (stride-1
    # windows); the stride-2 window selection is folded into w2's rows.
    m1 = jnp.maximum(y1[:, :-C1], y1[:, C1:])                  # (BT, 41*16)
    q1 = jnp.maximum(m1[:, :-2 * C1], m1[:, 2 * C1:])          # (BT, 39*16)

    # conv2 (16->32, k=3, pad=1) as one banded matmul (pool-1 selection,
    # padding and im2col folded into w2), + bias + ReLU
    y2 = jnp.maximum(mm(q1, w2_ref) + b2_ref[...], 0.0)        # (BT, 20*32)

    m2 = jnp.maximum(y2[:, :-C2], y2[:, C2:])                  # (BT, 19*32)
    q2 = jnp.maximum(m2[:, :-2 * C2], m2[:, 2 * C2:])          # (BT, 17*32)

    # fn1 (288->128): one matmul; pool-2 selection + NCL flatten folded into wf1
    h = jnp.maximum(mm(q2, wf1_ref) + bf1_ref[...], 0.0)       # (BT, 128)

    # fn2 (128->2) + Sigmoid
    logits = mm(h, wf2_ref) + bf2_ref[...]                     # (BT, 2)
    o_ref[...] = (1.0 / (1.0 + jnp.exp(-logits))).astype(o_ref.dtype)


# --------------------------------------------------------------------------- #
# One-time PyTorch-layout -> kernel-layout weight preparation (hoisted out of
# the per-call path).
# --------------------------------------------------------------------------- #
def prepare_params(params, matmul_dtype=jnp.float32):
    w1t = np.asarray(params["conv1_w"], np.float32)   # (16, 1, 3)
    b1t = np.asarray(params["conv1_b"], np.float32)   # (16,)
    w2t = np.asarray(params["conv2_w"], np.float32)   # (32, 16, 3)
    b2t = np.asarray(params["conv2_b"], np.float32)   # (32,)
    f1w = np.asarray(params["fn1_w"], np.float32)     # (128, 288)
    f1b = np.asarray(params["fn1_b"], np.float32)     # (128,)
    f2w = np.asarray(params["fn2_w"], np.float32)     # (2, 128)
    f2b = np.asarray(params["fn2_b"], np.float32)     # (2,)

    # conv1: banded (42 -> 42*16) matmul; 'same' padding folded in by omission.
    W1 = np.zeros((L_IN, L_IN * C1), np.float32)
    for l in range(L_IN):
        for k in range(3):
            t = l + k - 1
            if 0 <= t < L_IN:
                W1[t, l * C1:(l + 1) * C1] += w1t[:, 0, k]
    B1 = np.tile(b1t, L_IN)[None, :]                                  # (1, 672)

    # conv2: consumes q1 = stride-1 pool windows (39 blocks x 16 ch); the
    # stride-2 pool-1 selection (even blocks only), padding and k-tap im2col
    # are all folded into the banded weight.
    W2 = np.zeros(((2 * L1 - 1) * C1, L1 * C2), np.float32)           # (624, 640)
    for lo in range(L1):
        for k in range(3):
            li = lo + k - 1
            if 0 <= li < L1:
                W2[2 * li * C1:(2 * li + 1) * C1,
                   lo * C2:(lo + 1) * C2] += w2t[:, :, k].T           # (ci, co)
    B2 = np.tile(b2t, L1)[None, :]                                    # (1, 640)

    # fn1: consumes q2 (17 blocks x 32 ch); folds the stride-2 pool-2
    # selection and PyTorch's channel-major NCL flatten (index c*9 + l).
    WF1 = np.zeros(((2 * L2 - 1) * C2, HID), np.float32)              # (544, 128)
    t = f1w.reshape(HID, C2, L2).transpose(2, 1, 0)                   # (l, c, out)
    for l in range(L2):
        WF1[2 * l * C2:(2 * l + 1) * C2, :] = t[l]
    BF1 = f1b[None, :]                                                # (1, 128)

    WF2 = f2w.T                                                       # (128, 2)
    BF2 = f2b[None, :]                                                # (1, 2)

    md = matmul_dtype
    return (jnp.asarray(W1, md), jnp.asarray(B1, jnp.float32),
            jnp.asarray(W2, md), jnp.asarray(B2, jnp.float32),
            jnp.asarray(WF1, md), jnp.asarray(BF1, jnp.float32),
            jnp.asarray(WF2, md), jnp.asarray(BF2, jnp.float32))


# --------------------------------------------------------------------------- #
# Wrapper: batch-tiled parallel grid.
# --------------------------------------------------------------------------- #
def cnn_unsw_forward(x, kparams, *, bt=None):
    """x: (B, 1, 42) or (B, 42) float32 (NCL, like PyTorch). Returns (B, 2)."""
    if x.ndim == 3:
        x = x[:, 0, :]
    B = x.shape[0]
    x = x.astype(jnp.float32)

    if bt is None:
        bt = B if B <= 256 else 256
    if bt < B and bt % 8 != 0:
        bt = ((bt + 7) // 8) * 8              # keep block sublane dim legal
    n_tiles = (B + bt - 1) // bt
    Bp = n_tiles * bt
    if Bp != B:
        x = jnp.concatenate([x, jnp.zeros((Bp - B, L_IN), jnp.float32)], axis=0)

    def resident(a):                          # same block every grid step
        return pl.BlockSpec(a.shape, lambda i: (0, 0))

    out = pl.pallas_call(
        cnn_unsw_kernel,
        out_shape=jax.ShapeDtypeStruct((Bp, OUT), jnp.float32),
        grid=(n_tiles,),
        in_specs=[pl.BlockSpec((bt, L_IN), lambda i: (i, 0))]
                 + [resident(a) for a in kparams],
        out_specs=pl.BlockSpec((bt, OUT), lambda i: (i, 0)),
        compiler_params=pltpu.CompilerParams(dimension_semantics=("parallel",)),
    )(x, *kparams)
    return out[:B]


# --------------------------------------------------------------------------- #
# PyTorch-layout parameter init + pure-JAX reference (mirrors torch semantics)
# --------------------------------------------------------------------------- #
def init_params(key):
    ks = jax.random.split(key, 8)
    s = 0.1
    return {
        "conv1_w": jax.random.normal(ks[0], (C1, 1, 3), jnp.float32) * s,
        "conv1_b": jax.random.normal(ks[1], (C1,), jnp.float32) * s,
        "conv2_w": jax.random.normal(ks[2], (C2, C1, 3), jnp.float32) * s,
        "conv2_b": jax.random.normal(ks[3], (C2,), jnp.float32) * s,
        "fn1_w": jax.random.normal(ks[4], (HID, C2 * L2), jnp.float32) * s,
        "fn1_b": jax.random.normal(ks[5], (HID,), jnp.float32) * s,
        "fn2_w": jax.random.normal(ks[6], (OUT, HID), jnp.float32) * s,
        "fn2_b": jax.random.normal(ks[7], (OUT,), jnp.float32) * s,
    }


def ref_forward(x, p):
    def conv1d_pad1(x, W, b):                    # x:(B,C,L), W:(O,C,3)
        xp = jnp.pad(x, ((0, 0), (0, 0), (1, 1)))
        L = x.shape[2]
        y = sum(jnp.einsum("bcl,oc->bol", xp[:, :, k:k + L], W[:, :, k]) for k in range(3))
        return y + b[None, :, None]

    def maxpool_k4_s2(x):                        # x:(B,C,L)
        L = x.shape[2]
        n = (L - 4) // 2 + 1
        return jnp.stack([jnp.max(x[:, :, 2 * i:2 * i + 4], axis=2) for i in range(n)], axis=2)

    h = maxpool_k4_s2(jnp.maximum(conv1d_pad1(x, p["conv1_w"], p["conv1_b"]), 0.0))
    h = maxpool_k4_s2(jnp.maximum(conv1d_pad1(h, p["conv2_w"], p["conv2_b"]), 0.0))
    flat = h.reshape(h.shape[0], -1)             # channel-major flatten, like torch view
    h = jnp.maximum(flat @ p["fn1_w"].T + p["fn1_b"], 0.0)
    return jax.nn.sigmoid(h @ p["fn2_w"].T + p["fn2_b"])


if __name__ == "__main__":
    key = jax.random.PRNGKey(0)
    k_x, k_p, k_x2 = jax.random.split(key, 3)

    params = init_params(k_p)
    kparams = prepare_params(params)             # one-time weight re-layout

    # Small canonical check (single tile).
    B = 2
    x = jax.random.normal(k_x, (B, 1, L_IN), jnp.float32)   # NCL, like Conv1d input
    out = jax.block_until_ready(cnn_unsw_forward(x, kparams))
    ref = jax.block_until_ready(ref_forward(x, params))
    assert out.shape == (B, OUT)
    assert np.allclose(np.asarray(out), np.asarray(ref), atol=1e-4, rtol=1e-4), (out, ref)

    # Also exercise the batch-tiled (multi-grid-step, padded) path.
    B2 = 20
    x2 = jax.random.normal(k_x2, (B2, 1, L_IN), jnp.float32)
    out2 = jax.block_until_ready(cnn_unsw_forward(x2, kparams, bt=8))
    ref2 = jax.block_until_ready(ref_forward(x2, params))
    assert out2.shape == (B2, OUT)
    assert np.allclose(np.asarray(out2), np.asarray(ref2), atol=1e-4, rtol=1e-4)

    print("KERNEL_OK")
</pallas_src>

<mosaic_0001>
module attributes {stable_mosaic.version = 11 : i64} {
  func.func @cnn_unsw_kernel(%arg0: i32, %arg1: memref<2x42xf32, #tpu.memory_space<vmem>>, %arg2: memref<42x672xf32, #tpu.memory_space<vmem>>, %arg3: memref<1x672xf32, #tpu.memory_space<vmem>>, %arg4: memref<624x640xf32, #tpu.memory_space<vmem>>, %arg5: memref<1x640xf32, #tpu.memory_space<vmem>>, %arg6: memref<544x128xf32, #tpu.memory_space<vmem>>, %arg7: memref<1x128xf32, #tpu.memory_space<vmem>>, %arg8: memref<128x2xf32, #tpu.memory_space<vmem>>, %arg9: memref<1x2xf32, #tpu.memory_space<vmem>>, %arg10: memref<2x2xf32, #tpu.memory_space<vmem>>) attributes {dimension_semantics = [#tpu.dimension_semantics<parallel>], iteration_bounds = array<i64: 1>, scalar_prefetch = 0 : i64, scratch_operands = 0 : i64, tpu.core_type = #tpu.core_type<tc>, window_params = [{transform_indices = @transform_0, window_bounds = array<i64: 2, 42>}, {pipeline_mode = #tpu.pipeline_mode<synchronous>, transform_indices = @transform_1, window_bounds = array<i64: 42, 672>}, {pipeline_mode = #tpu.pipeline_mode<synchronous>, transform_indices = @transform_2, window_bounds = array<i64: 1, 672>}, {pipeline_mode = #tpu.pipeline_mode<synchronous>, transform_indices = @transform_3, window_bounds = array<i64: 624, 640>}, {pipeline_mode = #tpu.pipeline_mode<synchronous>, transform_indices = @transform_4, window_bounds = array<i64: 1, 640>}, {pipeline_mode = #tpu.pipeline_mode<synchronous>, transform_indices = @transform_5, window_bounds = array<i64: 544, 128>}, {pipeline_mode = #tpu.pipeline_mode<synchronous>, transform_indices = @transform_6, window_bounds = array<i64: 1, 128>}, {pipeline_mode = #tpu.pipeline_mode<synchronous>, transform_indices = @transform_7, window_bounds = array<i64: 128, 2>}, {pipeline_mode = #tpu.pipeline_mode<synchronous>, transform_indices = @transform_8, window_bounds = array<i64: 1, 2>}, {transform_indices = @transform_9, window_bounds = array<i64: 2, 2>}]} {
    %c0 = arith.constant 0 : index
    %c0_0 = arith.constant 0 : index
    %0 = vector.load %arg1[%c0, %c0_0] : memref<2x42xf32, #tpu.memory_space<vmem>>, vector<2x42xf32>
    %c0_1 = arith.constant 0 : index
    %c0_2 = arith.constant 0 : index
    %1 = vector.load %arg2[%c0_1, %c0_2] : memref<42x672xf32, #tpu.memory_space<vmem>>, vector<42x672xf32>
    %cst = arith.constant dense<0.000000e+00> : vector<2x672xf32>
    %2 = tpu.matmul %0, %1, %cst {dimension_numbers = #tpu.dot_dimension_numbers<[1], [0], [0], [1], [0, 0, 1, 1], [], []>} : vector<2x42xf32>, vector<42x672xf32>, vector<2x672xf32> -> vector<2x672xf32>
    %c0_3 = arith.constant 0 : index
    %c0_4 = arith.constant 0 : index
    %3 = vector.load %arg3[%c0_3, %c0_4] : memref<1x672xf32, #tpu.memory_space<vmem>>, vector<1x672xf32>
    %4 = vector.broadcast %3 : vector<1x672xf32> to vector<2x672xf32>
    %5 = arith.addf %2, %4 : vector<2x672xf32>
    %cst_5 = arith.constant 0.000000e+00 : f32
    %6 = vector.broadcast %cst_5 : f32 to vector<2x672xf32>
    %7 = arith.maximumf %5, %6 : vector<2x672xf32>
    %8 = vector.extract_strided_slice %7 {offsets = [0, 0], sizes = [2, 656], strides = [1, 1]} : vector<2x672xf32> to vector<2x656xf32>
    %9 = vector.extract_strided_slice %7 {offsets = [0, 16], sizes = [2, 656], strides = [1, 1]} : vector<2x672xf32> to vector<2x656xf32>
    %10 = arith.maximumf %8, %9 : vector<2x656xf32>
    %11 = vector.extract_strided_slice %10 {offsets = [0, 0], sizes = [2, 624], strides = [1, 1]} : vector<2x656xf32> to vector<2x624xf32>
    %12 = vector.extract_strided_slice %10 {offsets = [0, 32], sizes = [2, 624], strides = [1, 1]} : vector<2x656xf32> to vector<2x624xf32>
    %13 = arith.maximumf %11, %12 : vector<2x624xf32>
    %c0_6 = arith.constant 0 : index
    %c0_7 = arith.constant 0 : index
    %14 = vector.load %arg4[%c0_6, %c0_7] : memref<624x640xf32, #tpu.memory_space<vmem>>, vector<624x640xf32>
    %cst_8 = arith.constant dense<0.000000e+00> : vector<2x640xf32>
    %15 = tpu.matmul %13, %14, %cst_8 {dimension_numbers = #tpu.dot_dimension_numbers<[1], [0], [0], [1], [0, 0, 1, 1], [], []>} : vector<2x624xf32>, vector<624x640xf32>, vector<2x640xf32> -> vector<2x640xf32>
    %c0_9 = arith.constant 0 : index
    %c0_10 = arith.constant 0 : index
    %16 = vector.load %arg5[%c0_9, %c0_10] : memref<1x640xf32, #tpu.memory_space<vmem>>, vector<1x640xf32>
    %17 = vector.broadcast %16 : vector<1x640xf32> to vector<2x640xf32>
    %18 = arith.addf %15, %17 : vector<2x640xf32>
    %cst_11 = arith.constant 0.000000e+00 : f32
    %19 = vector.broadcast %cst_11 : f32 to vector<2x640xf32>
    %20 = arith.maximumf %18, %19 : vector<2x640xf32>
    %21 = vector.extract_strided_slice %20 {offsets = [0, 0], sizes = [2, 608], strides = [1, 1]} : vector<2x640xf32> to vector<2x608xf32>
    %22 = vector.extract_strided_slice %20 {offsets = [0, 32], sizes = [2, 608], strides = [1, 1]} : vector<2x640xf32> to vector<2x608xf32>
    %23 = arith.maximumf %21, %22 : vector<2x608xf32>
    %24 = vector.extract_strided_slice %23 {offsets = [0, 0], sizes = [2, 544], strides = [1, 1]} : vector<2x608xf32> to vector<2x544xf32>
    %25 = vector.extract_strided_slice %23 {offsets = [0, 64], sizes = [2, 544], strides = [1, 1]} : vector<2x608xf32> to vector<2x544xf32>
    %26 = arith.maximumf %24, %25 : vector<2x544xf32>
    %c0_12 = arith.constant 0 : index
    %c0_13 = arith.constant 0 : index
    %27 = vector.load %arg6[%c0_12, %c0_13] : memref<544x128xf32, #tpu.memory_space<vmem>>, vector<544x128xf32>
    %cst_14 = arith.constant dense<0.000000e+00> : vector<2x128xf32>
    %28 = tpu.matmul %26, %27, %cst_14 {dimension_numbers = #tpu.dot_dimension_numbers<[1], [0], [0], [1], [0, 0, 1, 1], [], []>} : vector<2x544xf32>, vector<544x128xf32>, vector<2x128xf32> -> vector<2x128xf32>
    %c0_15 = arith.constant 0 : index
    %c0_16 = arith.constant 0 : index
    %29 = vector.load %arg7[%c0_15, %c0_16] : memref<1x128xf32, #tpu.memory_space<vmem>>, vector<1x128xf32>
    %30 = vector.broadcast %29 : vector<1x128xf32> to vector<2x128xf32>
    %31 = arith.addf %28, %30 : vector<2x128xf32>
    %cst_17 = arith.constant 0.000000e+00 : f32
    %32 = vector.broadcast %cst_17 : f32 to vector<2x128xf32>
    %33 = arith.maximumf %31, %32 : vector<2x128xf32>
    %c0_18 = arith.constant 0 : index
    %c0_19 = arith.constant 0 : index
    %34 = vector.load %arg8[%c0_18, %c0_19] : memref<128x2xf32, #tpu.memory_space<vmem>>, vector<128x2xf32>
    %cst_20 = arith.constant dense<0.000000e+00> : vector<2x2xf32>
    %35 = tpu.matmul %33, %34, %cst_20 {dimension_numbers = #tpu.dot_dimension_numbers<[1], [0], [0], [1], [0, 0, 1, 1], [], []>} : vector<2x128xf32>, vector<128x2xf32>, vector<2x2xf32> -> vector<2x2xf32>
    %c0_21 = arith.constant 0 : index
    %c0_22 = arith.constant 0 : index
    %36 = vector.load %arg9[%c0_21, %c0_22] : memref<1x2xf32, #tpu.memory_space<vmem>>, vector<1x2xf32>
    %37 = vector.broadcast %36 : vector<1x2xf32> to vector<2x2xf32>
    %38 = arith.addf %35, %37 : vector<2x2xf32>
    %cst_23 = arith.constant 0.000000e+00 : f32
    %39 = vector.broadcast %cst_23 : f32 to vector<2x2xf32>
    %40 = arith.subf %39, %38 : vector<2x2xf32>
    %41 = math.exp %40 : vector<2x2xf32>
    %cst_24 = arith.constant 1.000000e+00 : f32
    %42 = vector.broadcast %cst_24 : f32 to vector<2x2xf32>
    %43 = arith.addf %42, %41 : vector<2x2xf32>
    %cst_25 = arith.constant 1.000000e+00 : f32
    %44 = vector.broadcast %cst_25 : f32 to vector<2x2xf32>
    %45 = arith.divf %44, %43 : vector<2x2xf32>
    %c0_26 = arith.constant 0 : index
    %c0_27 = arith.constant 0 : index
    %46 = vector.load %arg10[%c0_26, %c0_27] : memref<2x2xf32, #tpu.memory_space<vmem>>, vector<2x2xf32>
    tpu.vector_store %arg10[%c0_26, %c0_27], %45 {strides = array<i32>} : memref<2x2xf32, #tpu.memory_space<vmem>>, vector<2x2xf32>,
    return
  }
  func.func @transform_0(%arg0: i32) -> (i32, i32) {
    %c0_i32 = arith.constant 0 : i32
    %c0_i32_0 = arith.constant 0 : i32
    return %arg0, %c0_i32 : i32, i32
  }
  func.func @transform_1(%arg0: i32) -> (i32, i32) {
    %c0_i32 = arith.constant 0 : i32
    %c0_i32_0 = arith.constant 0 : i32
    %c0_i32_1 = arith.constant 0 : i32
    return %c0_i32, %c0_i32_0 : i32, i32
  }
  func.func @transform_2(%arg0: i32) -> (i32, i32) {
    %c0_i32 = arith.constant 0 : i32
    %c0_i32_0 = arith.constant 0 : i32
    %c0_i32_1 = arith.constant 0 : i32
    return %c0_i32, %c0_i32_0 : i32, i32
  }
  func.func @transform_3(%arg0: i32) -> (i32, i32) {
    %c0_i32 = arith.constant 0 : i32
    %c0_i32_0 = arith.constant 0 : i32
    %c0_i32_1 = arith.constant 0 : i32
    return %c0_i32, %c0_i32_0 : i32, i32
  }
  func.func @transform_4(%arg0: i32) -> (i32, i32) {
    %c0_i32 = arith.constant 0 : i32
    %c0_i32_0 = arith.constant 0 : i32
    %c0_i32_1 = arith.constant 0 : i32
    return %c0_i32, %c0_i32_0 : i32, i32
  }
  func.func @transform_5(%arg0: i32) -> (i32, i32) {
    %c0_i32 = arith.constant 0 : i32
    %c0_i32_0 = arith.constant 0 : i32
    %c0_i32_1 = arith.constant 0 : i32
    return %c0_i32, %c0_i32_0 : i32, i32
  }
  func.func @transform_6(%arg0: i32) -> (i32, i32) {
    %c0_i32 = arith.constant 0 : i32
    %c0_i32_0 = arith.constant 0 : i32
    %c0_i32_1 = arith.constant 0 : i32
    return %c0_i32, %c0_i32_0 : i32, i32
  }
  func.func @transform_7(%arg0: i32) -> (i32, i32) {
    %c0_i32 = arith.constant 0 : i32
    %c0_i32_0 = arith.constant 0 : i32
    %c0_i32_1 = arith.constant 0 : i32
    return %c0_i32, %c0_i32_0 : i32, i32
  }
  func.func @transform_8(%arg0: i32) -> (i32, i32) {
    %c0_i32 = arith.constant 0 : i32
    %c0_i32_0 = arith.constant 0 : i32
    %c0_i32_1 = arith.constant 0 : i32
    return %c0_i32, %c0_i32_0 : i32, i32
  }
  func.func @transform_9(%arg0: i32) -> (i32, i32) {
    %c0_i32 = arith.constant 0 : i32
    %c0_i32_0 = arith.constant 0 : i32
    return %arg0, %c0_i32 : i32, i32
  }
}

</mosaic_0001>

<llo_original>
// kernel: tpu_custom_call.1
$region0: #{tpu_custom_call.1}
  #allocation0 [shape = 'u32[]', space=smem, size = 0x4, offset = 0x4, fixed_abs, tag = 'smem constant byte address 0x4 - core index']
  #allocation1 [shape = 'u32[144,128]{1,0:T(1,128)}', space=vmem, size = 0x12000, scoped, tag = 'internal scratch']
  %s0 = inlined_call_operand.hbm [shape: f32[2,42], index: 0, kind: input, shape index: {}]
  %s1 = inlined_call_operand.hbm [shape: f32[42,672], index: 1, kind: input, shape index: {}]
  %s2 = inlined_call_operand.hbm [shape: f32[1,672], index: 2, kind: input, shape index: {}]
  %s3 = inlined_call_operand.hbm [shape: f32[624,640], index: 3, kind: input, shape index: {}]
  %s4 = inlined_call_operand.hbm [shape: f32[1,640], index: 4, kind: input, shape index: {}]
  %s5 = inlined_call_operand.hbm [shape: f32[544,128], index: 5, kind: input, shape index: {}]
  %s6 = inlined_call_operand.hbm [shape: f32[1,128], index: 6, kind: input, shape index: {}]
  %s7 = inlined_call_operand.vmem [shape: f32[128,2], index: 7, kind: input, shape index: {}]
  %s8 = inlined_call_operand.hbm [shape: f32[1,2], index: 8, kind: input, shape index: {}]
  %s9 = inlined_call_operand.hbm [shape: f32[2,2], index: 9, kind: output, shape index: {}]
  %s10 = sld [smem:[#allocation0]]
  $region78: #{tpu_custom_call.1} parent=0
    _
  %s12 = ssub.s32 1, %s10
  %s13 = scalar_select 0, %s12, %s10
  $region1: #{tpu_custom_call.1} parent=0
    #allocation2 [shape = 'u8[1024]{0}', space=vmem, size = 0x400, scoped, tag = 'input window, operand 0, single buffered']
    #allocation3 [shape = 's32[1]{0}', space=sflag, size = 0x4, scoped, tag = 'scoped memory for tpu_custom_call.1']
    #allocation4 [shape = 's32[1]{0}', space=sflag, size = 0x4, scoped, tag = 'scoped memory for tpu_custom_call.1']
    #allocation5 [shape = 'u8[147456]{0}', space=vmem, size = 0x24000, scoped, tag = 'input window, operand 1, single buffered']
    #allocation6 [shape = 's32[1]{0}', space=sflag, size = 0x4, scoped, tag = 'scoped memory for tpu_custom_call.1']
    #allocation7 [shape = 'u8[3072]{0}', space=vmem, size = 0xc00, scoped, tag = 'input window, operand 2, single buffered']
    #allocation8 [shape = 'u8[1597440]{0}', space=vmem, size = 0x186000, scoped, tag = 'input window, operand 3, single buffered']
    #allocation9 [shape = 's32[1]{0}', space=sflag, size = 0x4, scoped, tag = 'scoped memory for tpu_custom_call.1']
    #allocation10 [shape = 'u8[2560]{0}', space=vmem, size = 0xc00, scoped, tag = 'input window, operand 4, single buffered']
    #allocation11 [shape = 'u8[278528]{0}', space=vmem, size = 0x44000, scoped, tag = 'input window, operand 5, single buffered']
    #allocation12 [shape = 's32[1]{0}', space=sflag, size = 0x4, scoped, tag = 'scoped memory for tpu_custom_call.1']
    #allocation13 [shape = 'u8[512]{0}', space=vmem, size = 0x400, scoped, tag = 'input window, operand 6, single buffered']
    #allocation14 [shape = 'u8[512]{0}', space=vmem, size = 0x400, scoped, tag = 'input window, operand 8, single buffered']
    #allocation15 [shape = 's32[1]{0}', space=sflag, size = 0x4, scoped, tag = 'scoped memory for tpu_custom_call.1']
    #allocation16 [shape = 'u8[1024]{0}', space=vmem, size = 0x400, scoped, tag = 'output window, operand 0, single buffered']
    %14 = vsyncpa [#allocation3], 0
    %15 = vsyncpa [#allocation6], 0
    %16 = vsyncpa [#allocation9], 0
    %17 = vsyncpa [#allocation12], 0
    %18 = vsyncpa [#allocation15], 0
    %19 = vsyncpa [#allocation4], 0
    // Predicated region
    $region2: #{tpu_custom_call.1} parent=1 // pred_check
      _
    $region3: #{tpu_custom_call.1} parent=1 // pred_check_branch
      %21 = sbr.rel (0) target = $region5
    $region4: #{tpu_custom_call.1} parent=1 // pred_region
      %s23 = ssub.s32 32, 32
      %24 = vsyncadd [#allocation3], %s23
      %s26 = sshll.u32 [#allocation2], 4
      %s27 = int_to_ptr.vmem [resolvable:$true] %s26
      %29 = dma.hbm_to_vmem [thread:$0]  %s0, 32, %s27, [#allocation3]
    $region5: #{tpu_custom_call.1} parent=1 // pred_fallthru
      _
    // Predicated region
    $region6: #{tpu_custom_call.1} parent=1 // pred_check
      _
    $region7: #{tpu_custom_call.1} parent=1 // pred_check_branch
      %31 = sbr.rel (0) target = $region9
    $region8: #{tpu_custom_call.1} parent=1 // pred_region
      %s33 = ssub.s32 4608, 4608
      %34 = vsyncadd [#allocation6], %s33
      %s35 = sshll.u32 [#allocation5], 4
      %s36 = int_to_ptr.vmem [resolvable:$true] %s35
      %41 = dma.hbm_to_vmem [thread:$0]  %s1, 4608, %s36, [#allocation6], 768, 768, 48
    $region9: #{tpu_custom_call.1} parent=1 // pred_fallthru
      _
    // Predicated region
    $region10: #{tpu_custom_call.1} parent=1 // pred_check
      _
    $region11: #{tpu_custom_call.1} parent=1 // pred_check_branch
      %43 = sbr.rel (0) target = $region13
    $region12: #{tpu_custom_call.1} parent=1 // pred_region
      %s45 = ssub.s32 96, 96
      %46 = vsyncadd [#allocation6], %s45
      %s48 = sshll.u32 [#allocation7], 4
      %s49 = int_to_ptr.vmem [resolvable:$true] %s48
      %51 = dma.hbm_to_vmem [thread:$0]  %s2, 96, %s49, [#allocation6]
    $region13: #{tpu_custom_call.1} parent=1 // pred_fallthru
      _
    // Predicated region
    $region14: #{tpu_custom_call.1} parent=1 // pred_check
      _
    $region15: #{tpu_custom_call.1} parent=1 // pred_check_branch
      %53 = sbr.rel (0) target = $region17
    $region16: #{tpu_custom_call.1} parent=1 // pred_region
      %s55 = ssub.s32 49920, 49920
      %56 = vsyncadd [#allocation9], %s55
      %s57 = sshll.u32 [#allocation8], 4
      %s58 = int_to_ptr.vmem [resolvable:$true] %s57
      %63 = dma.hbm_to_vmem [thread:$0]  %s3, 49920, %s58, [#allocation9], 640, 640, 40
    $region17: #{tpu_custom_call.1} parent=1 // pred_fallthru
      _
    // Predicated region
    $region18: #{tpu_custom_call.1} parent=1 // pred_check
      _
    $region19: #{tpu_custom_call.1} parent=1 // pred_check_branch
      %65 = sbr.rel (0) target = $region21
    $region20: #{tpu_custom_call.1} parent=1 // pred_region
      %s67 = ssub.s32 80, 80
      %68 = vsyncadd [#allocation9], %s67
      %s70 = sshll.u32 [#allocation10], 4
      %s71 = int_to_ptr.vmem [resolvable:$true] %s70
      %73 = dma.hbm_to_vmem [thread:$0]  %s4, 80, %s71, [#allocation9]
    $region21: #{tpu_custom_call.1} parent=1 // pred_fallthru
      _
    // Predicated region
    $region22: #{tpu_custom_call.1} parent=1 // pred_check
      _
    $region23: #{tpu_custom_call.1} parent=1 // pred_check_branch
      %75 = sbr.rel (0) target = $region25
    $region24: #{tpu_custom_call.1} parent=1 // pred_region
      %s77 = ssub.s32 8704, 8704
      %78 = vsyncadd [#allocation12], %s77
      %s79 = sshll.u32 [#allocation11], 4
      %s80 = int_to_ptr.vmem [resolvable:$true] %s79
      %85 = dma.hbm_to_vmem [thread:$0]  %s5, 8704, %s80, [#allocation12], 128, 128, 8
    $region25: #{tpu_custom_call.1} parent=1 // pred_fallthru
      _
    // Predicated region
    $region26: #{tpu_custom_call.1} parent=1 // pred_check
      _
    $region27: #{tpu_custom_call.1} parent=1 // pred_check_branch
      %87 = sbr.rel (0) target = $region29
    $region28: #{tpu_custom_call.1} parent=1 // pred_region
      %s89 = ssub.s32 16, 16
      %90 = vsyncadd [#allocation12], %s89
      %s92 = sshll.u32 [#allocation13], 4
      %s93 = int_to_ptr.vmem [resolvable:$true] %s92
      %95 = dma.hbm_to_vmem [thread:$0]  %s6, 16, %s93, [#allocation12]
    $region29: #{tpu_custom_call.1} parent=1 // pred_fallthru
      _
    // Predicated region
    $region30: #{tpu_custom_call.1} parent=1 // pred_check
      _
    $region31: #{tpu_custom_call.1} parent=1 // pred_check_branch
      %97 = sbr.rel (0) target = $region33
    $region32: #{tpu_custom_call.1} parent=1 // pred_region
      _
    $region33: #{tpu_custom_call.1} parent=1 // pred_fallthru
      _
    // Predicated region
    $region34: #{tpu_custom_call.1} parent=1 // pred_check
      _
    $region35: #{tpu_custom_call.1} parent=1 // pred_check_branch
      %99 = sbr.rel (0) target = $region37
    $region36: #{tpu_custom_call.1} parent=1 // pred_region
      %s101 = ssub.s32 16, 16
      %102 = vsyncadd [#allocation15], %s101
      %s104 = sshll.u32 [#allocation14], 4
      %s105 = int_to_ptr.vmem [resolvable:$true] %s104
      %107 = dma.hbm_to_vmem [thread:$0]  %s8, 16, %s105, [#allocation15]
    $region37: #{tpu_custom_call.1} parent=1 // pred_fallthru
      _
    // Predicated region
    $region38: #{tpu_custom_call.1} parent=1 // pred_check
      _
    $region39: #{tpu_custom_call.1} parent=1 // pred_check_branch
      %109 = sbr.rel (0) target = $region41
    $region40: #{tpu_custom_call.1} parent=1 // pred_region
      %110 = dma.done [#allocation3], 32
    $region41: #{tpu_custom_call.1} parent=1 // pred_fallthru
      _
    // Predicated region
    $region42: #{tpu_custom_call.1} parent=1 // pred_check
      _
    $region43: #{tpu_custom_call.1} parent=1 // pred_check_branch
      %112 = sbr.rel (0) target = $region45
    $region44: #{tpu_custom_call.1} parent=1 // pred_region
      %113 = dma.done [#allocation6], 4608
    $region45: #{tpu_custom_call.1} parent=1 // pred_fallthru
      _
    // Predicated region
    $region46: #{tpu_custom_call.1} parent=1 // pred_check
      _
    $region47: #{tpu_custom_call.1} parent=1 // pred_check_branch
      %115 = sbr.rel (0) target = $region49
    $region48: #{tpu_custom_call.1} parent=1 // pred_region
      %116 = dma.done [#allocation6], 96
    $region49: #{tpu_custom_call.1} parent=1 // pred_fallthru
      _
    // Predicated region
    $region50: #{tpu_custom_call.1} parent=1 // pred_check
      _
    $region51: #{tpu_custom_call.1} parent=1 // pred_check_branch
      %118 = sbr.rel (0) target = $region53
    $region52: #{tpu_custom_call.1} parent=1 // pred_region
      %119 = dma.done [#allocation9], 49920
    $region53: #{tpu_custom_call.1} parent=1 // pred_fallthru
      _
    // Predicated region
    $region54: #{tpu_custom_call.1} parent=1 // pred_check
      _
    $region55: #{tpu_custom_call.1} parent=1 // pred_check_branch
      %121 = sbr.rel (0) target = $region57
    $region56: #{tpu_custom_call.1} parent=1 // pred_region
      %122 = dma.done [#allocation9], 80
    $region57: #{tpu_custom_call.1} parent=1 // pred_fallthru
      _
    // Predicated region
    $region58: #{tpu_custom_call.1} parent=1 // pred_check
      _
    $region59: #{tpu_custom_call.1} parent=1 // pred_check_branch
      %124 = sbr.rel (0) target = $region61
    $region60: #{tpu_custom_call.1} parent=1 // pred_region
      %125 = dma.done [#allocation12], 8704
    $region61: #{tpu_custom_call.1} parent=1 // pred_fallthru
      _
    // Predicated region
    $region62: #{tpu_custom_call.1} parent=1 // pred_check
      _
    $region63: #{tpu_custom_call.1} parent=1 // pred_check_branch
      %127 = sbr.rel (0) target = $region65
    $region64: #{tpu_custom_call.1} parent=1 // pred_region
      %128 = dma.done [#allocation12], 16
    $region65: #{tpu_custom_call.1} parent=1 // pred_fallthru
      _
    // Predicated region
    $region66: #{tpu_custom_call.1} parent=1 // pred_check
      _
    $region67: #{tpu_custom_call.1} parent=1 // pred_check_branch
      %130 = sbr.rel (0) target = $region69
    $region68: #{tpu_custom_call.1} parent=1 // pred_region
      %131 = dma.done [#allocation15], 16
    $region69: #{tpu_custom_call.1} parent=1 // pred_fallthru
      _
    %v132 = vld [vmem:[#allocation2] sm:$0x3]
    %v133 = vld [vmem:[#allocation5] sm:$0xff]
    %v134 = vld [vmem:[#allocation5 + $0x8] sm:$0xff]
    %v135 = vld [vmem:[#allocation5 + $0x10] sm:$0xff]
    %v136 = vld [vmem:[#allocation5 + $0x18] sm:$0xff]
    %v137 = vld [vmem:[#allocation5 + $0x20] sm:$0xff]
    %v138 = vld [vmem:[#allocation5 + $0x28] sm:$0xff]
    %v139 = vld [vmem:[#allocation5 + $0x30] sm:$0xff]
    %v140 = vld [vmem:[#allocation5 + $0x38] sm:$0xff]
    %v141 = vld [vmem:[#allocation5 + $0x40] sm:$0xff]
    %v142 = vld [vmem:[#allocation5 + $0x48] sm:$0xff]
    %v143 = vld [vmem:[#allocation5 + $0x50] sm:$0xff]
    %v144 = vld [vmem:[#allocation5 + $0x58] sm:$0xff]
    %v145 = vld [vmem:[#allocation5 + $0x60] sm:$0xff]
    %v146 = vld [vmem:[#allocation5 + $0x68] sm:$0xff]
    %v147 = vld [vmem:[#allocation5 + $0x70] sm:$0xff]
    %v148 = vld [vmem:[#allocation5 + $0x78] sm:$0xff]
    %v149 = vld [vmem:[#allocation5 + $0x80] sm:$0xff]
    %v150 = vld [vmem:[#allocation5 + $0x88] sm:$0xff]
    %v151 = vld [vmem:[#allocation5 + $0x90] sm:$0xff]
    %v152 = vld [vmem:[#allocation5 + $0x98] sm:$0xff]
    %v153 = vld [vmem:[#allocation5 + $0xa0] sm:$0xff]
    %v154 = vld [vmem:[#allocation5 + $0xa8] sm:$0xff]
    %v155 = vld [vmem:[#allocation5 + $0xb0] sm:$0xff]
    %v156 = vld [vmem:[#allocation5 + $0xb8] sm:$0xff]
    %v157 = vld [vmem:[#allocation5 + $0xc0] sm:$0xff]
    %v158 = vld [vmem:[#allocation5 + $0xc8] sm:$0xff]
    %v159 = vld [vmem:[#allocation5 + $0xd0] sm:$0xff]
    %v160 = vld [vmem:[#allocation5 + $0xd8] sm:$0xff]
    %v161 = vld [vmem:[#allocation5 + $0xe0] sm:$0xff]
    %v162 = vld [vmem:[#allocation5 + $0xe8] sm:$0xff]
    %v163 = vld [vmem:[#allocation5 + $0xf0] sm:$0x3]
    %v164 = vld [vmem:[#allocation5 + $0xf8] sm:$0x3]
    %v165 = vld [vmem:[#allocation5 + $0x100] sm:$0x3]
    %v166 = vld [vmem:[#allocation5 + $0x108] sm:$0x3]
    %v167 = vld [vmem:[#allocation5 + $0x110] sm:$0x3]
    %v168 = vld [vmem:[#allocation5 + $0x118] sm:$0x3]
    %v169 = vld [vmem:[#allocation7] sm:$0x3f]
    %v171 = vlaneseq
    %v172 = vshrl.u32 %v171, 7
    %v173 = vsub.s32 0, %v172
    %v174 = vrot.slane %v169, %v173
    %v175 = vlaneseq
    %v176 = vshrl.u32 %v175, 7
    %v177 = vsub.s32 1, %v176
    %v178 = vrot.slane %v169, %v177
    %v179 = vlaneseq
    %v180 = vshrl.u32 %v179, 7
    %v181 = vsub.s32 2, %v180
    %v182 = vrot.slane %v169, %v181
    %v183 = vlaneseq
    %v184 = vshrl.u32 %v183, 7
    %v185 = vsub.s32 3, %v184
    %v186 = vrot.slane %v169, %v185
    %v187 = vlaneseq
    %v188 = vshrl.u32 %v187, 7
    %v189 = vsub.s32 4, %v188
    %v190 = vrot.slane %v169, %v189
    %v191 = vlaneseq
    %v192 = vshrl.u32 %v191, 7
    %v193 = vsub.s32 5, %v192
    %v194 = vrot.slane %v169, %v193
    %vm201 = vcmask 343040
    %v203 = vsel %vm201, %v132, 0
    %vm205 = vcmask 1041408
    %v207 = vsel %vm205, %v163, 0
    %v210 = vsel %vm205, %v164, 0
    %v213 = vsel %vm205, %v165, 0
    %v216 = vsel %vm205, %v166, 0
    %v219 = vsel %vm205, %v167, 0
    %v222 = vsel %vm205, %v168, 0
    %224 = vmatprep.subr.mxu0 %v134
    %225 = vmatpush1.msra.mxu0 %v133
    %226 = vmatprep.subr.mxu0 %v140
    %227 = vmatpush1.msra.mxu0 %v139
    %228 = vmatprep.subr.mxu0 %v146
    %229 = vmatpush1.msra.mxu0 %v145
    %230 = vmatprep.subr.mxu0 %v152
    %231 = vmatpush1.msra.mxu0 %v151
    %232 = vmatprep.subr.mxu0 %v158
    %233 = vmatpush1.msra.mxu0 %v157
    %234 = vmatprep.subr.mxu0 %v210
    %235 = vmatpush1.msra.mxu0 %v207
    %236 = vmatprep.subr.mxu0 0.0
    %237 = vmatpush1.msra.mxu0 0.0
    %238 = vmatprep.subr.mxu0 0.0
    %239 = vmatpush1.msra.mxu0 0.0
    %240 = vmatprep.subr.mxu0 0.0
    %241 = vmatpush1.msra.mxu0 0.0
    %242 = vmatprep.subr.mxu0 0.0
    %243 = vmatpush1.msra.mxu0 0.0
    %244 = vmatprep.subr.mxu0 0.0
    %245 = vmatpush1.msra.mxu0 0.0
    %246 = vmatprep.subr.mxu0 0.0
    %247 = vmatpush1.msra.mxu0 0.0
    %248 = vmatprep.subr.mxu0 0.0
    %249 = vmatpush1.msra.mxu0 0.0
    %250 = vmatprep.subr.mxu0 0.0
    %251 = vmatpush1.msra.mxu0 0.0
    %252 = vmatprep.subr.mxu0 0.0
    %253 = vmatpush1.msra.mxu0 0.0
    %254 = vmatprep.subr.mxu0 0.0
    %255 = vmatpush1.msra.mxu0 0.0
    %256 = vmatprep.subr.mxu0 0.0
    %257 = vmatpush1.msra.mxu0 0.0
    %258 = vmatprep.subr.mxu0 0.0
    %259 = vmatpush1.msra.mxu0 0.0
    %260 = vmatprep.subr.mxu0 0.0
    %261 = vmatpush1.msra.mxu0 0.0
    %262 = vmatprep.subr.mxu0 0.0
    %263 = vmatpush1.msra.mxu0 0.0
    %264 = vmatprep.subr.mxu0 0.0
    %265 = vmatpush1.msra.mxu0 0.0
    %266 = vmatprep.subr.mxu0 0.0
    %267 = vmatpush1.msra.mxu0 0.0
    %268 = vmatprep.subr.mxu0 0.0
    %269 = vmatpush1.msra.mxu0 0.0
    %270 = vmatprep.subr.mxu0 0.0
    %271 = vmatpush1.msra.mxu0 0.0
    %272 = vmatprep.subr.mxu0 0.0
    %273 = vmatpush1.msra.mxu0 0.0
    %274 = vmatprep.subr.mxu0 0.0
    %275 = vmatpush1.msra.mxu0 0.0
    %276 = vmatprep.subr.mxu0 0.0
    %277 = vmatpush1.msra.mxu0 0.0
    %278 = vmatprep.subr.mxu0 0.0
    %279 = vmatpush1.msra.mxu0 0.0
    %280 = vmatprep.subr.mxu0 0.0
    %281 = vmatpush1.msra.mxu0 0.0
    %282 = vmatprep.subr.mxu0 0.0
    %283 = vmatpush1.msra.mxu0 0.0
    %284 = vmatprep.subr.mxu0 0.0
    %285 = vmatpush1.msra.mxu0 0.0
    %286 = vmatprep.subr.mxu0 0.0
    %287 = vmatpush1.msra.mxu0 0.0
    %288 = vmatprep.mubr.f32.mxu0 0.0
    %289 = vmatmul.mubr.f32.gmra.mrb[0].mxu0 %v203
    %v290 = vpop.f32.mrb[0].mxu0
    %v291 = vadd.f32 %v174, %v290
    %v292 = vpop.f32.mrb[0].mxu0
    %v293 = vadd.f32 %v178, %v292
    %294 = vdwg.mxu0
    %295 = vmatprep.subr.mxu0 %v136
    %296 = vmatpush1.msra.mxu0 %v135
    %297 = vmatprep.subr.mxu0 %v142
    %298 = vmatpush1.msra.mxu0 %v141
    %299 = vmatprep.subr.mxu0 %v148
    %300 = vmatpush1.msra.mxu0 %v147
    %301 = vmatprep.subr.mxu0 %v154
    %302 = vmatpush1.msra.mxu0 %v153
    %303 = vmatprep.subr.mxu0 %v160
    %304 = vmatpush1.msra.mxu0 %v159
    %305 = vmatprep.subr.mxu0 %v216
    %306 = vmatpush1.msra.mxu0 %v213
    %307 = vmatprep.subr.mxu0 0.0
    %308 = vmatpush1.msra.mxu0 0.0
    %309 = vmatprep.subr.mxu0 0.0
    %310 = vmatpush1.msra.mxu0 0.0
    %311 = vmatprep.subr.mxu0 0.0
    %312 = vmatpush1.msra.mxu0 0.0
    %313 = vmatprep.subr.mxu0 0.0
    %314 = vmatpush1.msra.mxu0 0.0
    %315 = vmatprep.subr.mxu0 0.0
    %316 = vmatpush1.msra.mxu0 0.0
    %317 = vmatprep.subr.mxu0 0.0
    %318 = vmatpush1.msra.mxu0 0.0
    %319 = vmatprep.subr.mxu0 0.0
    %320 = vmatpush1.msra.mxu0 0.0
    %321 = vmatprep.subr.mxu0 0.0
    %322 = vmatpush1.msra.mxu0 0.0
    %323 = vmatprep.subr.mxu0 0.0
    %324 = vmatpush1.msra.mxu0 0.0
    %325 = vmatprep.subr.mxu0 0.0
    %326 = vmatpush1.msra.mxu0 0.0
    %327 = vmatprep.subr.mxu0 0.0
    %328 = vmatpush1.msra.mxu0 0.0
    %329 = vmatprep.subr.mxu0 0.0
    %330 = vmatpush1.msra.mxu0 0.0
    %331 = vmatprep.subr.mxu0 0.0
    %332 = vmatpush1.msra.mxu0 0.0
    %333 = vmatprep.subr.mxu0 0.0
    %334 = vmatpush1.msra.mxu0 0.0
    %335 = vmatprep.subr.mxu0 0.0
    %336 = vmatpush1.msra.mxu0 0.0
    %337 = vmatprep.subr.mxu0 0.0
    %338 = vmatpush1.msra.mxu0 0.0
    %339 = vmatprep.subr.mxu0 0.0
    %340 = vmatpush1.msra.mxu0 0.0
    %341 = vmatprep.subr.mxu0 0.0
    %342 = vmatpush1.msra.mxu0 0.0
    %343 = vmatprep.subr.mxu0 0.0
    %344 = vmatpush1.msra.mxu0 0.0
    %345 = vmatprep.subr.mxu0 0.0
    %346 = vmatpush1.msra.mxu0 0.0
    %347 = vmatprep.subr.mxu0 0.0
    %348 = vmatpush1.msra.mxu0 0.0
    %349 = vmatprep.subr.mxu0 0.0
    %350 = vmatpush1.msra.mxu0 0.0
    %351 = vmatprep.subr.mxu0 0.0
    %352 = vmatpush1.msra.mxu0 0.0
    %353 = vmatprep.subr.mxu0 0.0
    %354 = vmatpush1.msra.mxu0 0.0
    %355 = vmatprep.subr.mxu0 0.0
    %356 = vmatpush1.msra.mxu0 0.0
    %357 = vmatprep.subr.mxu0 0.0
    %358 = vmatpush1.msra.mxu0 0.0
    %359 = vmatprep.mubr.f32.mxu0 0.0
    %360 = vmatmul.mubr.f32.gmra.mrb[0].mxu0 %v203
    %v361 = vpop.f32.mrb[0].mxu0
    %v362 = vadd.f32 %v182, %v361
    %v363 = vpop.f32.mrb[0].mxu0
    %v364 = vadd.f32 %v186, %v363
    %365 = vdwg.mxu0
    %366 = vmatprep.subr.mxu0 %v138
    %367 = vmatpush1.msra.mxu0 %v137
    %368 = vmatprep.subr.mxu0 %v144
    %369 = vmatpush1.msra.mxu0 %v143
    %370 = vmatprep.subr.mxu0 %v150
    %371 = vmatpush1.msra.mxu0 %v149
    %372 = vmatprep.subr.mxu0 %v156
    %373 = vmatpush1.msra.mxu0 %v155
    %374 = vmatprep.subr.mxu0 %v162
    %375 = vmatpush1.msra.mxu0 %v161
    %376 = vmatprep.subr.mxu0 %v222
    %377 = vmatpush1.msra.mxu0 %v219
    %378 = vmatprep.subr.mxu0 0.0
    %379 = vmatpush1.msra.mxu0 0.0
    %380 = vmatprep.subr.mxu0 0.0
    %381 = vmatpush1.msra.mxu0 0.0
    %382 = vmatprep.subr.mxu0 0.0
    %383 = vmatpush1.msra.mxu0 0.0
    %384 = vmatprep.subr.mxu0 0.0
    %385 = vmatpush1.msra.mxu0 0.0
    %386 = vmatprep.subr.mxu0 0.0
    %387 = vmatpush1.msra.mxu0 0.0
    %388 = vmatprep.subr.mxu0 0.0
    %389 = vmatpush1.msra.mxu0 0.0
    %390 = vmatprep.subr.mxu0 0.0
    %391 = vmatpush1.msra.mxu0 0.0
    %392 = vmatprep.subr.mxu0 0.0
    %393 = vmatpush1.msra.mxu0 0.0
    %394 = vmatprep.subr.mxu0 0.0
    %395 = vmatpush1.msra.mxu0 0.0
    %396 = vmatprep.subr.mxu0 0.0
    %397 = vmatpush1.msra.mxu0 0.0
    %398 = vmatprep.subr.mxu0 0.0
    %399 = vmatpush1.msra.mxu0 0.0
    %400 = vmatprep.subr.mxu0 0.0
    %401 = vmatpush1.msra.mxu0 0.0
    %402 = vmatprep.subr.mxu0 0.0
    %403 = vmatpush1.msra.mxu0 0.0
    %404 = vmatprep.subr.mxu0 0.0
    %405 = vmatpush1.msra.mxu0 0.0
    %406 = vmatprep.subr.mxu0 0.0
    %407 = vmatpush1.msra.mxu0 0.0
    %408 = vmatprep.subr.mxu0 0.0
    %409 = vmatpush1.msra.mxu0 0.0
    %410 = vmatprep.subr.mxu0 0.0
    %411 = vmatpush1.msra.mxu0 0.0
    %412 = vmatprep.subr.mxu0 0.0
    %413 = vmatpush1.msra.mxu0 0.0
    %414 = vmatprep.subr.mxu0 0.0
    %415 = vmatpush1.msra.mxu0 0.0
    %416 = vmatprep.subr.mxu0 0.0
    %417 = vmatpush1.msra.mxu0 0.0
    %418 = vmatprep.subr.mxu0 0.0
    %419 = vmatpush1.msra.mxu0 0.0
    %420 = vmatprep.subr.mxu0 0.0
    %421 = vmatpush1.msra.mxu0 0.0
    %422 = vmatprep.subr.mxu0 0.0
    %423 = vmatpush1.msra.mxu0 0.0
    %424 = vmatprep.subr.mxu0 0.0
    %425 = vmatpush1.msra.mxu0 0.0
    %426 = vmatprep.subr.mxu0 0.0
    %427 = vmatpush1.msra.mxu0 0.0
    %428 = vmatprep.subr.mxu0 0.0
    %429 = vmatpush1.msra.mxu0 0.0
    %430 = vmatprep.mubr.f32.mxu0 0.0
    %431 = vmatmul.mubr.f32.gmra.mrb[0].mxu0 %v203
    %v432 = vpop.f32.mrb[0].mxu0
    %v433 = vadd.f32 %v190, %v432
    %v434 = vpop.f32.mrb[0].mxu0
    %v435 = vadd.f32 %v194, %v434
    %436 = vdwg.mxu0
    %v437 = vmax.f32 %v291, 0.0
    %v438 = vmax.f32 %v293, 0.0
    %v439 = vmax.f32 %v362, 0.0
    %v440 = vmax.f32 %v364, 0.0
    %v441 = vmax.f32 %v433, 0.0
    %v442 = vmax.f32 %v435, 0.0
    %449 = vrot.lane.b32.xlu0 %v437, 112
    %v450 = vpop.permute.xlu0 %449
    %451 = vrot.lane.b32.xlu0 %v438, 112
    %v452 = vpop.permute.xlu0 %451
    %453 = vrot.lane.b32.xlu0 %v439, 112
    %v454 = vpop.permute.xlu0 %453
    %455 = vrot.lane.b32.xlu0 %v440, 112
    %v456 = vpop.permute.xlu0 %455
    %457 = vrot.lane.b32.xlu0 %v441, 112
    %v458 = vpop.permute.xlu0 %457
    %459 = vrot.lane.b32.xlu0 %v442, 112
    %v460 = vpop.permute.xlu0 %459
    %vm461 = vcmask 916480
    %v462 = vsel %vm461, %v450, %v452
    %v463 = vsel %vm461, %v452, %v454
    %v464 = vsel %vm461, %v454, %v456
    %v465 = vsel %vm461, %v456, %v458
    %v466 = vsel %vm461, %v458, %v460
    %v473 = vmax.f32 %v437, %v462
    %v474 = vmax.f32 %v438, %v463
    %v475 = vmax.f32 %v439, %v464
    %v476 = vmax.f32 %v440, %v465
    %v477 = vmax.f32 %v441, %v466
    %v478 = vmax.f32 %v442, %v460
    %485 = vrot.lane.b32.xlu0 %v473, 96
    %v486 = vpop.permute.xlu0 %485
    %487 = vrot.lane.b32.xlu0 %v474, 96
    %v488 = vpop.permute.xlu0 %487
    %489 = vrot.lane.b32.xlu0 %v475, 96
    %v490 = vpop.permute.xlu0 %489
    %491 = vrot.lane.b32.xlu0 %v476, 96
    %v492 = vpop.permute.xlu0 %491
    %493 = vrot.lane.b32.xlu0 %v477, 96
    %v494 = vpop.permute.xlu0 %493
    %495 = vrot.lane.b32.xlu0 %v478, 96
    %v496 = vpop.permute.xlu0 %495
    %vm497 = vcmask 785408
    %v498 = vsel %vm497, %v486, %v488
    %v499 = vsel %vm497, %v488, %v490
    %v500 = vsel %vm497, %v490, %v492
    %v501 = vsel %vm497, %v492, %v494
    %v502 = vsel %vm497, %v494, %v496
    %v508 = vmax.f32 %v473, %v498
    %v509 = vmax.f32 %v474, %v499
    %v510 = vmax.f32 %v475, %v500
    %v511 = vmax.f32 %v476, %v501
    %v512 = vmax.f32 %v477, %v502
    %v513 = vld [vmem:[#allocation8] sm:$0xff]
    %v514 = vld [vmem:[#allocation8 + $0x8] sm:$0xff]
    %v515 = vld [vmem:[#allocation8 + $0x10] sm:$0xff]
    %v516 = vld [vmem:[#allocation8 + $0x18] sm:$0xff]
    %v517 = vld [vmem:[#allocation8 + $0x20] sm:$0xff]
    %v518 = vld [vmem:[#allocation8 + $0x28] sm:$0xff]
    %v519 = vld [vmem:[#allocation8 + $0x30] sm:$0xff]
    %v520 = vld [vmem:[#allocation8 + $0x38] sm:$0xff]
    %v521 = vld [vmem:[#allocation8 + $0x40] sm:$0xff]
    %v522 = vld [vmem:[#allocation8 + $0x48] sm:$0xff]
    %v523 = vld [vmem:[#allocation8 + $0x50] sm:$0xff]
    %v524 = vld [vmem:[#allocation8 + $0x58] sm:$0xff]
    %v525 = vld [vmem:[#allocation8 + $0x60] sm:$0xff]
    %v526 = vld [vmem:[#allocation8 + $0x68] sm:$0xff]
    %v527 = vld [vmem:[#allocation8 + $0x70] sm:$0xff]
    %v528 = vld [vmem:[#allocation8 + $0x78] sm:$0xff]
    %v529 = vld [vmem:[#allocation8 + $0x80] sm:$0xff]
    %v530 = vld [vmem:[#allocation8 + $0x88] sm:$0xff]
    %v531 = vld [vmem:[#allocation8 + $0x90] sm:$0xff]
    %v532 = vld [vmem:[#allocation8 + $0x98] sm:$0xff]
    %v533 = vld [vmem:[#allocation8 + $0xa0] sm:$0xff]
    %v534 = vld [vmem:[#allocation8 + $0xa8] sm:$0xff]
    %v535 = vld [vmem:[#allocation8 + $0xb0] sm:$0xff]
    %v536 = vld [vmem:[#allocation8 + $0xb8] sm:$0xff]
    %v537 = vld [vmem:[#allocation8 + $0xc0] sm:$0xff]
    %v538 = vld [vmem:[#allocation8 + $0xc8] sm:$0xff]
    %v539 = vld [vmem:[#allocation8 + $0xd0] sm:$0xff]
    %v540 = vld [vmem:[#allocation8 + $0xd8] sm:$0xff]
    %v541 = vld [vmem:[#allocation8 + $0xe0] sm:$0xff]
    %v542 = vld [vmem:[#allocation8 + $0xe8] sm:$0xff]
    %v543 = vld [vmem:[#allocation8 + $0xf0] sm:$0xff]
    %v544 = vld [vmem:[#allocation8 + $0xf8] sm:$0xff]
    %v545 = vld [vmem:[#allocation8 + $0x100] sm:$0xff]
    %v546 = vld [vmem:[#allocation8 + $0x108] sm:$0xff]
    %v547 = vld [vmem:[#allocation8 + $0x110] sm:$0xff]
    %v548 = vld [vmem:[#allocation8 + $0x118] sm:$0xff]
    %v549 = vld [vmem:[#allocation8 + $0x120] sm:$0xff]
    %v550 = vld [vmem:[#allocation8 + $0x128] sm:$0xff]
    %v551 = vld [vmem:[#allocation8 + $0x130] sm:$0xff]
    %v552 = vld [vmem:[#allocation8 + $0x138] sm:$0xff]
    %v553 = vld [vmem:[#allocation8 + $0x140] sm:$0xff]
    %v554 = vld [vmem:[#allocation8 + $0x148] sm:$0xff]
    %v555 = vld [vmem:[#allocation8 + $0x150] sm:$0xff]
    %v556 = vld [vmem:[#allocation8 + $0x158] sm:$0xff]
    %v557 = vld [vmem:[#allocation8 + $0x160] sm:$0xff]
    %v558 = vld [vmem:[#allocation8 + $0x168] sm:$0xff]
    %v559 = vld [vmem:[#allocation8 + $0x170] sm:$0xff]
    %v560 = vld [vmem:[#allocation8 + $0x178] sm:$0xff]
    %v561 = vld [vmem:[#allocation8 + $0x180] sm:$0xff]
    %v562 = vld [vmem:[#allocation8 + $0x188] sm:$0xff]
    %v563 = vld [vmem:[#allocation8 + $0x190] sm:$0xff]
    %v564 = vld [vmem:[#allocation8 + $0x198] sm:$0xff]
    %v565 = vld [vmem:[#allocation8 + $0x1a0] sm:$0xff]
    %v566 = vld [vmem:[#allocation8 + $0x1a8] sm:$0xff]
    %v567 = vld [vmem:[#allocation8 + $0x1b0] sm:$0xff]
    %v568 = vld [vmem:[#allocation8 + $0x1b8] sm:$0xff]
    %v569 = vld [vmem:[#allocation8 + $0x1c0] sm:$0xff]
    %v570 = vld [vmem:[#allocation8 + $0x1c8] sm:$0xff]
    %v571 = vld [vmem:[#allocation8 + $0x1d0] sm:$0xff]
    %v572 = vld [vmem:[#allocation8 + $0x1d8] sm:$0xff]
    %v573 = vld [vmem:[#allocation8 + $0x1e0] sm:$0xff]
    %v574 = vld [vmem:[#allocation8 + $0x1e8] sm:$0xff]
    %v575 = vld [vmem:[#allocation8 + $0x1f0] sm:$0xff]
    %v576 = vld [vmem:[#allocation8 + $0x1f8] sm:$0xff]
    %v577 = vld [vmem:[#allocation8 + $0x200] sm:$0xff]
    %v578 = vld [vmem:[#allocation8 + $0x208] sm:$0xff]
    %v579 = vld [vmem:[#allocation8 + $0x210] sm:$0xff]
    %v580 = vld [vmem:[#allocation8 + $0x218] sm:$0xff]
    %v581 = vld [vmem:[#allocation8 + $0x220] sm:$0xff]
    %v582 = vld [vmem:[#allocation8 + $0x228] sm:$0xff]
    %v583 = vld [vmem:[#allocation8 + $0x230] sm:$0xff]
    %v584 = vld [vmem:[#allocation8 + $0x238] sm:$0xff]
    %v585 = vld [vmem:[#allocation8 + $0x240] sm:$0xff]
    %v586 = vld [vmem:[#allocation8 + $0x248] sm:$0xff]
    %v587 = vld [vmem:[#allocation8 + $0x250] sm:$0xff]
    %v588 = vld [vmem:[#allocation8 + $0x258] sm:$0xff]
    %v589 = vld [vmem:[#allocation8 + $0x260] sm:$0xff]
    %v590 = vld [vmem:[#allocation8 + $0x268] sm:$0xff]
    %v591 = vld [vmem:[#allocation8 + $0x270] sm:$0xff]
    %v592 = vld [vmem:[#allocation8 + $0x278] sm:$0xff]
    %v593 = vld [vmem:[#allocation8 + $0x280] sm:$0xff]
    %v594 = vld [vmem:[#allocation8 + $0x288] sm:$0xff]
    %v595 = vld [vmem:[#allocation8 + $0x290] sm:$0xff]
    %v596 = vld [vmem:[#allocation8 + $0x298] sm:$0xff]
    %v597 = vld [vmem:[#allocation8 + $0x2a0] sm:$0xff]
    %v598 = vld [vmem:[#allocation8 + $0x2a8] sm:$0xff]
    %v599 = vld [vmem:[#allocation8 + $0x2b0] sm:$0xff]
    %v600 = vld [vmem:[#allocation8 + $0x2b8] sm:$0xff]
    %v601 = vld [vmem:[#allocation8 + $0x2c0] sm:$0xff]
    %v602 = vld [vmem:[#allocation8 + $0x2c8] sm:$0xff]
    %v603 = vld [vmem:[#allocation8 + $0x2d0] sm:$0xff]
    %v604 = vld [vmem:[#allocation8 + $0x2d8] sm:$0xff]
    %v605 = vld [vmem:[#allocation8 + $0x2e0] sm:$0xff]
    %v606 = vld [vmem:[#allocation8 + $0x2e8] sm:$0xff]
    %v607 = vld [vmem:[#allocation8 + $0x2f0] sm:$0xff]
    %v608 = vld [vmem:[#allocation8 + $0x2f8] sm:$0xff]
    %v609 = vld [vmem:[#allocation8 + $0x300] sm:$0xff]
    %v610 = vld [vmem:[#allocation8 + $0x308] sm:$0xff]
    %v611 = vld [vmem:[#allocation8 + $0x310] sm:$0xff]
    %v612 = vld [vmem:[#allocation8 + $0x318] sm:$0xff]
    %v613 = vld [vmem:[#allocation8 + $0x320] sm:$0xff]
    %v614 = vld [vmem:[#allocation8 + $0x328] sm:$0xff]
    %v615 = vld [vmem:[#allocation8 + $0x330] sm:$0xff]
    %v616 = vld [vmem:[#allocation8 + $0x338] sm:$0xff]
    %v617 = vld [vmem:[#allocation8 + $0x340] sm:$0xff]
    %v618 = vld [vmem:[#allocation8 + $0x348] sm:$0xff]
    %v619 = vld [vmem:[#allocation8 + $0x350] sm:$0xff]
    %v620 = vld [vmem:[#allocation8 + $0x358] sm:$0xff]
    %v621 = vld [vmem:[#allocation8 + $0x360] sm:$0xff]
    %v622 = vld [vmem:[#allocation8 + $0x368] sm:$0xff]
    %v623 = vld [vmem:[#allocation8 + $0x370] sm:$0xff]
    %v624 = vld [vmem:[#allocation8 + $0x378] sm:$0xff]
    %v625 = vld [vmem:[#allocation8 + $0x380] sm:$0xff]
    %v626 = vld [vmem:[#allocation8 + $0x388] sm:$0xff]
    %v627 = vld [vmem:[#allocation8 + $0x390] sm:$0xff]
    %v628 = vld [vmem:[#allocation8 + $0x398] sm:$0xff]
    %v629 = vld [vmem:[#allocation8 + $0x3a0] sm:$0xff]
    %v630 = vld [vmem:[#allocation8 + $0x3a8] sm:$0xff]
    %v631 = vld [vmem:[#allocation8 + $0x3b0] sm:$0xff]
    %v632 = vld [vmem:[#allocation8 + $0x3b8] sm:$0xff]
    %v633 = vld [vmem:[#allocation8 + $0x3c0] sm:$0xff]
    %v634 = vld [vmem:[#allocation8 + $0x3c8] sm:$0xff]
    %v635 = vld [vmem:[#allocation8 + $0x3d0] sm:$0xff]
    %v636 = vld [vmem:[#allocation8 + $0x3d8] sm:$0xff]
    %v637 = vld [vmem:[#allocation8 + $0x3e0] sm:$0xff]
    %v638 = vld [vmem:[#allocation8 + $0x3e8] sm:$0xff]
    %v639 = vld [vmem:[#allocation8 + $0x3f0] sm:$0xff]
    %v640 = vld [vmem:[#allocation8 + $0x3f8] sm:$0xff]
    %v641 = vld [vmem:[#allocation8 + $0x400] sm:$0xff]
    %v642 = vld [vmem:[#allocation8 + $0x408] sm:$0xff]
    %v643 = vld [vmem:[#allocation8 + $0x410] sm:$0xff]
    %v644 = vld [vmem:[#allocation8 + $0x418] sm:$0xff]
    %v645 = vld [vmem:[#allocation8 + $0x420] sm:$0xff]
    %v646 = vld [vmem:[#allocation8 + $0x428] sm:$0xff]
    %v647 = vld [vmem:[#allocation8 + $0x430] sm:$0xff]
    %v648 = vld [vmem:[#allocation8 + $0x438] sm:$0xff]
    %v649 = vld [vmem:[#allocation8 + $0x440] sm:$0xff]
    %v650 = vld [vmem:[#allocation8 + $0x448] sm:$0xff]
    %v651 = vld [vmem:[#allocation8 + $0x450] sm:$0xff]
    %v652 = vld [vmem:[#allocation8 + $0x458] sm:$0xff]
    %v653 = vld [vmem:[#allocation8 + $0x460] sm:$0xff]
    %v654 = vld [vmem:[#allocation8 + $0x468] sm:$0xff]
    %v655 = vld [vmem:[#allocation8 + $0x470] sm:$0xff]
    %v656 = vld [vmem:[#allocation8 + $0x478] sm:$0xff]
    %v657 = vld [vmem:[#allocation8 + $0x480] sm:$0xff]
    %v658 = vld [vmem:[#allocation8 + $0x488] sm:$0xff]
    %v659 = vld [vmem:[#allocation8 + $0x490] sm:$0xff]
    %v660 = vld [vmem:[#allocation8 + $0x498] sm:$0xff]
    %v661 = vld [vmem:[#allocation8 + $0x4a0] sm:$0xff]
    %v662 = vld [vmem:[#allocation8 + $0x4a8] sm:$0xff]
    %v663 = vld [vmem:[#allocation8 + $0x4b0] sm:$0xff]
    %v664 = vld [vmem:[#allocation8 + $0x4b8] sm:$0xff]
    %v665 = vld [vmem:[#allocation8 + $0x4c0] sm:$0xff]
    %v666 = vld [vmem:[#allocation8 + $0x4c8] sm:$0xff]
    %v667 = vld [vmem:[#allocation8 + $0x4d0] sm:$0xff]
    %v668 = vld [vmem:[#allocation8 + $0x4d8] sm:$0xff]
    %v669 = vld [vmem:[#allocation8 + $0x4e0] sm:$0xff]
    %v670 = vld [vmem:[#allocation8 + $0x4e8] sm:$0xff]
    %v671 = vld [vmem:[#allocation8 + $0x4f0] sm:$0xff]
    %v672 = vld [vmem:[#allocation8 + $0x4f8] sm:$0xff]
    %v673 = vld [vmem:[#allocation8 + $0x500] sm:$0xff]
    %v674 = vld [vmem:[#allocation8 + $0x508] sm:$0xff]
    %v675 = vld [vmem:[#allocation8 + $0x510] sm:$0xff]
    %v676 = vld [vmem:[#allocation8 + $0x518] sm:$0xff]
    %v677 = vld [vmem:[#allocation8 + $0x520] sm:$0xff]
    %v678 = vld [vmem:[#allocation8 + $0x528] sm:$0xff]
    %v679 = vld [vmem:[#allocation8 + $0x530] sm:$0xff]
    %v680 = vld [vmem:[#allocation8 + $0x538] sm:$0xff]
    %v681 = vld [vmem:[#allocation8 + $0x540] sm:$0xff]
    %v682 = vld [vmem:[#allocation8 + $0x548] sm:$0xff]
    %v683 = vld [vmem:[#allocation8 + $0x550] sm:$0xff]
    %v684 = vld [vmem:[#allocation8 + $0x558] sm:$0xff]
    %v685 = vld [vmem:[#allocation8 + $0x560] sm:$0xff]
    %v686 = vld [vmem:[#allocation8 + $0x568] sm:$0xff]
    %v687 = vld [vmem:[#allocation8 + $0x570] sm:$0xff]
    %v688 = vld [vmem:[#allocation8 + $0x578] sm:$0xff]
    %v689 = vld [vmem:[#allocation8 + $0x580] sm:$0xff]
    %v690 = vld [vmem:[#allocation8 + $0x588] sm:$0xff]
    %v691 = vld [vmem:[#allocation8 + $0x590] sm:$0xff]
    %v692 = vld [vmem:[#allocation8 + $0x598] sm:$0xff]
    %v693 = vld [vmem:[#allocation8 + $0x5a0] sm:$0xff]
    %v694 = vld [vmem:[#allocation8 + $0x5a8] sm:$0xff]
    %v695 = vld [vmem:[#allocation8 + $0x5b0] sm:$0xff]
    %v696 = vld [vmem:[#allocation8 + $0x5b8] sm:$0xff]
    %v697 = vld [vmem:[#allocation8 + $0x5c0] sm:$0xff]
    %v698 = vld [vmem:[#allocation8 + $0x5c8] sm:$0xff]
    %v699 = vld [vmem:[#allocation8 + $0x5d0] sm:$0xff]
    %v700 = vld [vmem:[#allocation8 + $0x5d8] sm:$0xff]
    %v701 = vld [vmem:[#allocation8 + $0x5e0] sm:$0xff]
    %v702 = vld [vmem:[#allocation8 + $0x5e8] sm:$0xff]
    %v703 = vld [vmem:[#allocation8 + $0x5f0] sm:$0xff]
    %v704 = vld [vmem:[#allocation8 + $0x5f8] sm:$0xff]
    %v705 = vld [vmem:[#allocation8 + $0x600] sm:$0xff]
    %v706 = vld [vmem:[#allocation8 + $0x608] sm:$0xff]
    %v707 = vld [vmem:[#allocation8 + $0x610] sm:$0xff]
    %v708 = vld [vmem:[#allocation8 + $0x618] sm:$0xff]
    %v709 = vld [vmem:[#allocation8 + $0x620] sm:$0xff]
    %v710 = vld [vmem:[#allocation8 + $0x628] sm:$0xff]
    %v711 = vld [vmem:[#allocation8 + $0x630] sm:$0xff]
    %v712 = vld [vmem:[#allocation8 + $0x638] sm:$0xff]
    %v713 = vld [vmem:[#allocation8 + $0x640] sm:$0xff]
    %v714 = vld [vmem:[#allocation8 + $0x648] sm:$0xff]
    %v715 = vld [vmem:[#allocation8 + $0x650] sm:$0xff]
    %v716 = vld [vmem:[#allocation8 + $0x658] sm:$0xff]
    %v717 = vld [vmem:[#allocation8 + $0x660] sm:$0xff]
    %v718 = vld [vmem:[#allocation8 + $0x668] sm:$0xff]
    %v719 = vld [vmem:[#allocation8 + $0x670] sm:$0xff]
    %v720 = vld [vmem:[#allocation8 + $0x678] sm:$0xff]
    %v721 = vld [vmem:[#allocation8 + $0x680] sm:$0xff]
    %v722 = vld [vmem:[#allocation8 + $0x688] sm:$0xff]
    %v723 = vld [vmem:[#allocation8 + $0x690] sm:$0xff]
    %v724 = vld [vmem:[#allocation8 + $0x698] sm:$0xff]
    %v725 = vld [vmem:[#allocation8 + $0x6a0] sm:$0xff]
    %v726 = vld [vmem:[#allocation8 + $0x6a8] sm:$0xff]
    %v727 = vld [vmem:[#allocation8 + $0x6b0] sm:$0xff]
    %v728 = vld [vmem:[#allocation8 + $0x6b8] sm:$0xff]
    %v729 = vld [vmem:[#allocation8 + $0x6c0] sm:$0xff]
    %v730 = vld [vmem:[#allocation8 + $0x6c8] sm:$0xff]
    %v731 = vld [vmem:[#allocation8 + $0x6d0] sm:$0xff]
    %v732 = vld [vmem:[#allocation8 + $0x6d8] sm:$0xff]
    %v733 = vld [vmem:[#allocation8 + $0x6e0] sm:$0xff]
    %v734 = vld [vmem:[#allocation8 + $0x6e8] sm:$0xff]
    %v735 = vld [vmem:[#allocation8 + $0x6f0] sm:$0xff]
    %v736 = vld [vmem:[#allocation8 + $0x6f8] sm:$0xff]
    %v737 = vld [vmem:[#allocation8 + $0x700] sm:$0xff]
    %v738 = vld [vmem:[#allocation8 + $0x708] sm:$0xff]
    %v739 = vld [vmem:[#allocation8 + $0x710] sm:$0xff]
    %v740 = vld [vmem:[#allocation8 + $0x718] sm:$0xff]
    %v741 = vld [vmem:[#allocation8 + $0x720] sm:$0xff]
    %v742 = vld [vmem:[#allocation8 + $0x728] sm:$0xff]
    %v743 = vld [vmem:[#allocation8 + $0x730] sm:$0xff]
    %v744 = vld [vmem:[#allocation8 + $0x738] sm:$0xff]
    %v745 = vld [vmem:[#allocation8 + $0x740] sm:$0xff]
    %v746 = vld [vmem:[#allocation8 + $0x748] sm:$0xff]
    %v747 = vld [vmem:[#allocation8 + $0x750] sm:$0xff]
    %v748 = vld [vmem:[#allocation8 + $0x758] sm:$0xff]
    %v749 = vld [vmem:[#allocation8 + $0x760] sm:$0xff]
    %v750 = vld [vmem:[#allocation8 + $0x768] sm:$0xff]
    %v751 = vld [vmem:[#allocation8 + $0x770] sm:$0xff]
    %v752 = vld [vmem:[#allocation8 + $0x778] sm:$0xff]
    %v753 = vld [vmem:[#allocation8 + $0x780] sm:$0xff]
    %v754 = vld [vmem:[#allocation8 + $0x788] sm:$0xff]
    %v755 = vld [vmem:[#allocation8 + $0x790] sm:$0xff]
    %v756 = vld [vmem:[#allocation8 + $0x798] sm:$0xff]
    %v757 = vld [vmem:[#allocation8 + $0x7a0] sm:$0xff]
    %v758 = vld [vmem:[#allocation8 + $0x7a8] sm:$0xff]
    %v759 = vld [vmem:[#allocation8 + $0x7b0] sm:$0xff]
    %v760 = vld [vmem:[#allocation8 + $0x7b8] sm:$0xff]
    %v761 = vld [vmem:[#allocation8 + $0x7c0] sm:$0xff]
    %v762 = vld [vmem:[#allocation8 + $0x7c8] sm:$0xff]
    %v763 = vld [vmem:[#allocation8 + $0x7d0] sm:$0xff]
    %v764 = vld [vmem:[#allocation8 + $0x7d8] sm:$0xff]
    %v765 = vld [vmem:[#allocation8 + $0x7e0] sm:$0xff]
    %v766 = vld [vmem:[#allocation8 + $0x7e8] sm:$0xff]
    %v767 = vld [vmem:[#allocation8 + $0x7f0] sm:$0xff]
    %v768 = vld [vmem:[#allocation8 + $0x7f8] sm:$0xff]
    %v769 = vld [vmem:[#allocation8 + $0x800] sm:$0xff]
    %v770 = vld [vmem:[#allocation8 + $0x808] sm:$0xff]
    %v771 = vld [vmem:[#allocation8 + $0x810] sm:$0xff]
    %v772 = vld [vmem:[#allocation8 + $0x818] sm:$0xff]
    %v773 = vld [vmem:[#allocation8 + $0x820] sm:$0xff]
    %v774 = vld [vmem:[#allocation8 + $0x828] sm:$0xff]
    %v775 = vld [vmem:[#allocation8 + $0x830] sm:$0xff]
    %v776 = vld [vmem:[#allocation8 + $0x838] sm:$0xff]
    %v777 = vld [vmem:[#allocation8 + $0x840] sm:$0xff]
    %v778 = vld [vmem:[#allocation8 + $0x848] sm:$0xff]
    %v779 = vld [vmem:[#allocation8 + $0x850] sm:$0xff]
    %v780 = vld [vmem:[#allocation8 + $0x858] sm:$0xff]
    %v781 = vld [vmem:[#allocation8 + $0x860] sm:$0xff]
    %v782 = vld [vmem:[#allocation8 + $0x868] sm:$0xff]
    %v783 = vld [vmem:[#allocation8 + $0x870] sm:$0xff]
    %v784 = vld [vmem:[#allocation8 + $0x878] sm:$0xff]
    %v785 = vld [vmem:[#allocation8 + $0x880] sm:$0xff]
    %v786 = vld [vmem:[#allocation8 + $0x888] sm:$0xff]
    %v787 = vld [vmem:[#allocation8 + $0x890] sm:$0xff]
    %v788 = vld [vmem:[#allocation8 + $0x898] sm:$0xff]
    %v789 = vld [vmem:[#allocation8 + $0x8a0] sm:$0xff]
    %v790 = vld [vmem:[#allocation8 + $0x8a8] sm:$0xff]
    %v791 = vld [vmem:[#allocation8 + $0x8b0] sm:$0xff]
    %v792 = vld [vmem:[#allocation8 + $0x8b8] sm:$0xff]
    %v793 = vld [vmem:[#allocation8 + $0x8c0] sm:$0xff]
    %v794 = vld [vmem:[#allocation8 + $0x8c8] sm:$0xff]
    %v795 = vld [vmem:[#allocation8 + $0x8d0] sm:$0xff]
    %v796 = vld [vmem:[#allocation8 + $0x8d8] sm:$0xff]
    %v797 = vld [vmem:[#allocation8 + $0x8e0] sm:$0xff]
    %v798 = vld [vmem:[#allocation8 + $0x8e8] sm:$0xff]
    %v799 = vld [vmem:[#allocation8 + $0x8f0] sm:$0xff]
    %v800 = vld [vmem:[#allocation8 + $0x8f8] sm:$0xff]
    %v801 = vld [vmem:[#allocation8 + $0x900] sm:$0xff]
    %v802 = vld [vmem:[#allocation8 + $0x908] sm:$0xff]
    %v803 = vld [vmem:[#allocation8 + $0x910] sm:$0xff]
    %v804 = vld [vmem:[#allocation8 + $0x918] sm:$0xff]
    %v805 = vld [vmem:[#allocation8 + $0x920] sm:$0xff]
    %v806 = vld [vmem:[#allocation8 + $0x928] sm:$0xff]
    %v807 = vld [vmem:[#allocation8 + $0x930] sm:$0xff]
    %v808 = vld [vmem:[#allocation8 + $0x938] sm:$0xff]
    %v809 = vld [vmem:[#allocation8 + $0x940] sm:$0xff]
    %v810 = vld [vmem:[#allocation8 + $0x948] sm:$0xff]
    %v811 = vld [vmem:[#allocation8 + $0x950] sm:$0xff]
    %v812 = vld [vmem:[#allocation8 + $0x958] sm:$0xff]
    %v813 = vld [vmem:[#allocation8 + $0x960] sm:$0xff]
    %v814 = vld [vmem:[#allocation8 + $0x968] sm:$0xff]
    %v815 = vld [vmem:[#allocation8 + $0x970] sm:$0xff]
    %v816 = vld [vmem:[#allocation8 + $0x978] sm:$0xff]
    %v817 = vld [vmem:[#allocation8 + $0x980] sm:$0xff]
    %v818 = vld [vmem:[#allocation8 + $0x988] sm:$0xff]
    %v819 = vld [vmem:[#allocation8 + $0x990] sm:$0xff]
    %v820 = vld [vmem:[#allocation8 + $0x998] sm:$0xff]
    %v821 = vld [vmem:[#allocation8 + $0x9a0] sm:$0xff]
    %v822 = vld [vmem:[#allocation8 + $0x9a8] sm:$0xff]
    %v823 = vld [vmem:[#allocation8 + $0x9b0] sm:$0xff]
    %v824 = vld [vmem:[#allocation8 + $0x9b8] sm:$0xff]
    %v825 = vld [vmem:[#allocation8 + $0x9c0] sm:$0xff]
    %v826 = vld [vmem:[#allocation8 + $0x9c8] sm:$0xff]
    %v827 = vld [vmem:[#allocation8 + $0x9d0] sm:$0xff]
    %v828 = vld [vmem:[#allocation8 + $0x9d8] sm:$0xff]
    %v829 = vld [vmem:[#allocation8 + $0x9e0] sm:$0xff]
    %v830 = vld [vmem:[#allocation8 + $0x9e8] sm:$0xff]
    %v831 = vld [vmem:[#allocation8 + $0x9f0] sm:$0xff]
    %v832 = vld [vmem:[#allocation8 + $0x9f8] sm:$0xff]
    %v833 = vld [vmem:[#allocation8 + $0xa00] sm:$0xff]
    %v834 = vld [vmem:[#allocation8 + $0xa08] sm:$0xff]
    %v835 = vld [vmem:[#allocation8 + $0xa10] sm:$0xff]
    %v836 = vld [vmem:[#allocation8 + $0xa18] sm:$0xff]
    %v837 = vld [vmem:[#allocation8 + $0xa20] sm:$0xff]
    %v838 = vld [vmem:[#allocation8 + $0xa28] sm:$0xff]
    %v839 = vld [vmem:[#allocation8 + $0xa30] sm:$0xff]
    %v840 = vld [vmem:[#allocation8 + $0xa38] sm:$0xff]
    %v841 = vld [vmem:[#allocation8 + $0xa40] sm:$0xff]
    %v842 = vld [vmem:[#allocation8 + $0xa48] sm:$0xff]
    %v843 = vld [vmem:[#allocation8 + $0xa50] sm:$0xff]
    %v844 = vld [vmem:[#allocation8 + $0xa58] sm:$0xff]
    %v845 = vld [vmem:[#allocation8 + $0xa60] sm:$0xff]
    %v846 = vld [vmem:[#allocation8 + $0xa68] sm:$0xff]
    %v847 = vld [vmem:[#allocation8 + $0xa70] sm:$0xff]
    %v848 = vld [vmem:[#allocation8 + $0xa78] sm:$0xff]
    %v849 = vld [vmem:[#allocation8 + $0xa80] sm:$0xff]
    %v850 = vld [vmem:[#allocation8 + $0xa88] sm:$0xff]
    %v851 = vld [vmem:[#allocation8 + $0xa90] sm:$0xff]
    %v852 = vld [vmem:[#allocation8 + $0xa98] sm:$0xff]
    %v853 = vld [vmem:[#allocation8 + $0xaa0] sm:$0xff]
    %v854 = vld [vmem:[#allocation8 + $0xaa8] sm:$0xff]
    %v855 = vld [vmem:[#allocation8 + $0xab0] sm:$0xff]
    %v856 = vld [vmem:[#allocation8 + $0xab8] sm:$0xff]
    %v857 = vld [vmem:[#allocation8 + $0xac0] sm:$0xff]
    %v858 = vld [vmem:[#allocation8 + $0xac8] sm:$0xff]
    %v859 = vld [vmem:[#allocation8 + $0xad0] sm:$0xff]
    %v860 = vld [vmem:[#allocation8 + $0xad8] sm:$0xff]
    %v861 = vld [vmem:[#allocation8 + $0xae0] sm:$0xff]
    %v862 = vld [vmem:[#allocation8 + $0xae8] sm:$0xff]
    %v863 = vld [vmem:[#allocation8 + $0xaf0] sm:$0xff]
    %v864 = vld [vmem:[#allocation8 + $0xaf8] sm:$0xff]
    %v865 = vld [vmem:[#allocation8 + $0xb00] sm:$0xff]
    %v866 = vld [vmem:[#allocation8 + $0xb08] sm:$0xff]
    %v867 = vld [vmem:[#allocation8 + $0xb10] sm:$0xff]
    %v868 = vld [vmem:[#allocation8 + $0xb18] sm:$0xff]
    %v869 = vld [vmem:[#allocation8 + $0xb20] sm:$0xff]
    %v870 = vld [vmem:[#allocation8 + $0xb28] sm:$0xff]
    %v871 = vld [vmem:[#allocation8 + $0xb30] sm:$0xff]
    %v872 = vld [vmem:[#allocation8 + $0xb38] sm:$0xff]
    %v873 = vld [vmem:[#allocation8 + $0xb40] sm:$0xff]
    %v874 = vld [vmem:[#allocation8 + $0xb48] sm:$0xff]
    %v875 = vld [vmem:[#allocation8 + $0xb50] sm:$0xff]
    %v876 = vld [vmem:[#allocation8 + $0xb58] sm:$0xff]
    %v877 = vld [vmem:[#allocation8 + $0xb60] sm:$0xff]
    %v878 = vld [vmem:[#allocation8 + $0xb68] sm:$0xff]
    %v879 = vld [vmem:[#allocation8 + $0xb70] sm:$0xff]
    %v880 = vld [vmem:[#allocation8 + $0xb78] sm:$0xff]
    %v881 = vld [vmem:[#allocation8 + $0xb80] sm:$0xff]
    %v882 = vld [vmem:[#allocation8 + $0xb88] sm:$0xff]
    %v883 = vld [vmem:[#allocation8 + $0xb90] sm:$0xff]
    %v884 = vld [vmem:[#allocation8 + $0xb98] sm:$0xff]
    %v885 = vld [vmem:[#allocation8 + $0xba0] sm:$0xff]
    %v886 = vld [vmem:[#allocation8 + $0xba8] sm:$0xff]
    %v887 = vld [vmem:[#allocation8 + $0xbb0] sm:$0xff]
    %v888 = vld [vmem:[#allocation8 + $0xbb8] sm:$0xff]
    %v889 = vld [vmem:[#allocation8 + $0xbc0] sm:$0xff]
    %v890 = vld [vmem:[#allocation8 + $0xbc8] sm:$0xff]
    %v891 = vld [vmem:[#allocation8 + $0xbd0] sm:$0xff]
    %v892 = vld [vmem:[#allocation8 + $0xbd8] sm:$0xff]
    %v893 = vld [vmem:[#allocation8 + $0xbe0] sm:$0xff]
    %v894 = vld [vmem:[#allocation8 + $0xbe8] sm:$0xff]
    %v895 = vld [vmem:[#allocation8 + $0xbf0] sm:$0xff]
    %v896 = vld [vmem:[#allocation8 + $0xbf8] sm:$0xff]
    %v897 = vld [vmem:[#allocation8 + $0xc00] sm:$0xff]
    %v898 = vld [vmem:[#allocation8 + $0xc08] sm:$0xff]
    %v899 = vld [vmem:[#allocation8 + $0xc10] sm:$0xff]
    %v900 = vld [vmem:[#allocation8 + $0xc18] sm:$0xff]
    %v901 = vld [vmem:[#allocation8 + $0xc20] sm:$0xff]
    %v902 = vld [vmem:[#allocation8 + $0xc28] sm:$0xff]
    %v903 = vld [vmem:[#allocation10] sm:$0x1f]
    %v905 = vlaneseq
    %v906 = vshrl.u32 %v905, 7
    %v907 = vsub.s32 0, %v906
    %v908 = vrot.slane %v903, %v907
    %v909 = vlaneseq
    %v910 = vshrl.u32 %v909, 7
    %v911 = vsub.s32 1, %v910
    %v912 = vrot.slane %v903, %v911
    %v913 = vlaneseq
    %v914 = vshrl.u32 %v913, 7
    %v915 = vsub.s32 2, %v914
    %v916 = vrot.slane %v903, %v915
    %v917 = vlaneseq
    %v918 = vshrl.u32 %v917, 7
    %v919 = vsub.s32 3, %v918
    %v920 = vrot.slane %v903, %v919
    %v921 = vlaneseq
    %v922 = vshrl.u32 %v921, 7
    %v923 = vsub.s32 4, %v922
    %v924 = vrot.slane %v903, %v923
    %v931 = vsel %vm461, %v512, 0
    %933 = vmatprep.subr.mxu0 %v514
    %934 = vmatpush1.msra.mxu0 %v513
    %935 = vmatprep.subr.mxu0 %v519
    %936 = vmatpush1.msra.mxu0 %v518
    %937 = vmatprep.subr.mxu0 %v524
    %938 = vmatpush1.msra.mxu0 %v523
    %939 = vmatprep.subr.mxu0 %v529
    %940 = vmatpush1.msra.mxu0 %v528
    %941 = vmatprep.subr.mxu0 %v534
    %942 = vmatpush1.msra.mxu0 %v533
    %943 = vmatprep.subr.mxu0 %v539
    %944 = vmatpush1.msra.mxu0 %v538
    %945 = vmatprep.subr.mxu0 %v544
    %946 = vmatpush1.msra.mxu0 %v543
    %947 = vmatprep.subr.mxu0 %v549
    %948 = vmatpush1.msra.mxu0 %v548
    %949 = vmatprep.subr.mxu0 %v554
    %950 = vmatpush1.msra.mxu0 %v553
    %951 = vmatprep.subr.mxu0 %v559
    %952 = vmatpush1.msra.mxu0 %v558
    %953 = vmatprep.subr.mxu0 %v564
    %954 = vmatpush1.msra.mxu0 %v563
    %955 = vmatprep.subr.mxu0 %v569
    %956 = vmatpush1.msra.mxu0 %v568
    %957 = vmatprep.subr.mxu0 %v574
    %958 = vmatpush1.msra.mxu0 %v573
    %959 = vmatprep.subr.mxu0 %v579
    %960 = vmatpush1.msra.mxu0 %v578
    %961 = vmatprep.subr.mxu0 %v584
    %962 = vmatpush1.msra.mxu0 %v583
    %963 = vmatprep.subr.mxu0 %v589
    %964 = vmatpush1.msra.mxu0 %v588
    %965 = vmatprep.subr.mxu0 %v594
    %966 = vmatpush1.msra.mxu0 %v593
    %967 = vmatprep.subr.mxu0 %v599
    %968 = vmatpush1.msra.mxu0 %v598
    %969 = vmatprep.subr.mxu0 %v604
    %970 = vmatpush1.msra.mxu0 %v603
    %971 = vmatprep.subr.mxu0 %v609
    %972 = vmatpush1.msra.mxu0 %v608
    %973 = vmatprep.subr.mxu0 %v614
    %974 = vmatpush1.msra.mxu0 %v613
    %975 = vmatprep.subr.mxu0 %v619
    %976 = vmatpush1.msra.mxu0 %v618
    %977 = vmatprep.subr.mxu0 %v624
    %978 = vmatpush1.msra.mxu0 %v623
    %979 = vmatprep.subr.mxu0 %v629
    %980 = vmatpush1.msra.mxu0 %v628
    %981 = vmatprep.subr.mxu0 %v634
    %982 = vmatpush1.msra.mxu0 %v633
    %983 = vmatprep.subr.mxu0 %v639
    %984 = vmatpush1.msra.mxu0 %v638
    %985 = vmatprep.subr.mxu0 %v644
    %986 = vmatpush1.msra.mxu0 %v643
    %987 = vmatprep.subr.mxu0 %v649
    %988 = vmatpush1.msra.mxu0 %v648
    %989 = vmatprep.subr.mxu0 %v654
    %990 = vmatpush1.msra.mxu0 %v653
    %991 = vmatprep.subr.mxu0 %v659
    %992 = vmatpush1.msra.mxu0 %v658
    %993 = vmatprep.subr.mxu0 %v664
    %994 = vmatpush1.msra.mxu0 %v663
    %995 = vmatprep.subr.mxu0 %v669
    %996 = vmatpush1.msra.mxu0 %v668
    %997 = vmatprep.mubr.f32.mxu0 %v509
    %998 = vmatmul.mubr.f32.gmra.mrb[0].mxu0 %v508
    %v999 = vpop.f32.mrb[0].mxu0
    %v1000 = vadd.f32 %v908, %v999
    %v1001 = vpop.f32.mrb[0].mxu0
    %v1002 = vadd.f32 %v912, %v1001
    %1003 = vdwg.mxu0
    %1004 = vmatprep.subr.mxu0 %v674
    %1005 = vmatpush1.msra.mxu0 %v673
    %1006 = vmatprep.subr.mxu0 %v679
    %1007 = vmatpush1.msra.mxu0 %v678
    %1008 = vmatprep.subr.mxu0 %v684
    %1009 = vmatpush1.msra.mxu0 %v683
    %1010 = vmatprep.subr.mxu0 %v689
    %1011 = vmatpush1.msra.mxu0 %v688
    %1012 = vmatprep.subr.mxu0 %v694
    %1013 = vmatpush1.msra.mxu0 %v693
    %1014 = vmatprep.subr.mxu0 %v699
    %1015 = vmatpush1.msra.mxu0 %v698
    %1016 = vmatprep.subr.mxu0 %v704
    %1017 = vmatpush1.msra.mxu0 %v703
    %1018 = vmatprep.subr.mxu0 %v709
    %1019 = vmatpush1.msra.mxu0 %v708
    %1020 = vmatprep.subr.mxu0 %v714
    %1021 = vmatpush1.msra.mxu0 %v713
    %1022 = vmatprep.subr.mxu0 %v719
    %1023 = vmatpush1.msra.mxu0 %v718
    %1024 = vmatprep.subr.mxu0 %v724
    %1025 = vmatpush1.msra.mxu0 %v723
    %1026 = vmatprep.subr.mxu0 %v729
    %1027 = vmatpush1.msra.mxu0 %v728
    %1028 = vmatprep.subr.mxu0 %v734
    %1029 = vmatpush1.msra.mxu0 %v733
    %1030 = vmatprep.subr.mxu0 %v739
    %1031 = vmatpush1.msra.mxu0 %v738
    %1032 = vmatprep.subr.mxu0 %v744
    %1033 = vmatpush1.msra.mxu0 %v743
    %1034 = vmatprep.subr.mxu0 %v749
    %1035 = vmatpush1.msra.mxu0 %v748
    %1036 = vmatprep.subr.mxu0 %v754
    %1037 = vmatpush1.msra.mxu0 %v753
    %1038 = vmatprep.subr.mxu0 %v759
    %1039 = vmatpush1.msra.mxu0 %v758
    %1040 = vmatprep.subr.mxu0 %v764
    %1041 = vmatpush1.msra.mxu0 %v763
    %1042 = vmatprep.subr.mxu0 %v769
    %1043 = vmatpush1.msra.mxu0 %v768
    %1044 = vmatprep.subr.mxu0 %v774
    %1045 = vmatpush1.msra.mxu0 %v773
    %1046 = vmatprep.subr.mxu0 %v779
    %1047 = vmatpush1.msra.mxu0 %v778
    %1048 = vmatprep.subr.mxu0 %v784
    %1049 = vmatpush1.msra.mxu0 %v783
    %1050 = vmatprep.subr.mxu0 %v789
    %1051 = vmatpush1.msra.mxu0 %v788
    %1052 = vmatprep.subr.mxu0 %v794
    %1053 = vmatpush1.msra.mxu0 %v793
    %1054 = vmatprep.subr.mxu0 %v799
    %1055 = vmatpush1.msra.mxu0 %v798
    %1056 = vmatprep.subr.mxu0 %v804
    %1057 = vmatpush1.msra.mxu0 %v803
    %1058 = vmatprep.subr.mxu0 %v809
    %1059 = vmatpush1.msra.mxu0 %v808
    %1060 = vmatprep.subr.mxu0 %v814
    %1061 = vmatpush1.msra.mxu0 %v813
    %1062 = vmatprep.subr.mxu0 %v819
    %1063 = vmatpush1.msra.mxu0 %v818
    %1064 = vmatprep.subr.mxu0 %v824
    %1065 = vmatpush1.msra.mxu0 %v823
    %1066 = vmatprep.subr.mxu0 %v829
    %1067 = vmatpush1.msra.mxu0 %v828
    %1068 = vmatprep.mubr.f32.mxu0 %v511
    %1069 = vmatmul.mubr.f32.gmra.mrb[0].mxu0 %v510
    %v1070 = vpop.f32.mrb[0].mxu0
    %v1071 = vadd.f32 %v1000, %v1070
    %v1072 = vpop.f32.mrb[0].mxu0
    %v1073 = vadd.f32 %v1002, %v1072
    %1074 = vdwg.mxu0
    %1075 = vmatprep.subr.mxu0 %v834
    %1076 = vmatpush1.msra.mxu0 %v833
    %1077 = vmatprep.subr.mxu0 %v839
    %1078 = vmatpush1.msra.mxu0 %v838
    %1079 = vmatprep.subr.mxu0 %v844
    %1080 = vmatpush1.msra.mxu0 %v843
    %1081 = vmatprep.subr.mxu0 %v849
    %1082 = vmatpush1.msra.mxu0 %v848
    %1083 = vmatprep.subr.mxu0 %v854
    %1084 = vmatpush1.msra.mxu0 %v853
    %1085 = vmatprep.subr.mxu0 %v859
    %1086 = vmatpush1.msra.mxu0 %v858
    %1087 = vmatprep.subr.mxu0 %v864
    %1088 = vmatpush1.msra.mxu0 %v863
    %1089 = vmatprep.subr.mxu0 %v869
    %1090 = vmatpush1.msra.mxu0 %v868
    %1091 = vmatprep.subr.mxu0 %v874
    %1092 = vmatpush1.msra.mxu0 %v873
    %1093 = vmatprep.subr.mxu0 %v879
    %1094 = vmatpush1.msra.mxu0 %v878
    %1095 = vmatprep.subr.mxu0 %v884
    %1096 = vmatpush1.msra.mxu0 %v883
    %1097 = vmatprep.subr.mxu0 %v889
    %1098 = vmatpush1.msra.mxu0 %v888
    %1099 = vmatprep.subr.mxu0 %v894
    %1100 = vmatpush1.msra.mxu0 %v893
    %1101 = vmatprep.subr.mxu0 %v899
    %1102 = vmatpush1.msra.mxu0 %v898
    %1103 = vmatprep.subr.mxu0 0.0
    %1104 = vmatpush1.msra.mxu0 0.0
    %1105 = vmatprep.subr.mxu0 0.0
    %1106 = vmatpush1.msra.mxu0 0.0
    %1107 = vmatprep.subr.mxu0 0.0
    %1108 = vmatpush1.msra.mxu0 0.0
    %1109 = vmatprep.subr.mxu0 0.0
    %1110 = vmatpush1.msra.mxu0 0.0
    %1111 = vmatprep.subr.mxu0 0.0
    %1112 = vmatpush1.msra.mxu0 0.0
    %1113 = vmatprep.subr.mxu0 0.0
    %1114 = vmatpush1.msra.mxu0 0.0
    %1115 = vmatprep.subr.mxu0 0.0
    %1116 = vmatpush1.msra.mxu0 0.0
    %1117 = vmatprep.subr.mxu0 0.0
    %1118 = vmatpush1.msra.mxu0 0.0
    %1119 = vmatprep.subr.mxu0 0.0
    %1120 = vmatpush1.msra.mxu0 0.0
    %1121 = vmatprep.subr.mxu0 0.0
    %1122 = vmatpush1.msra.mxu0 0.0
    %1123 = vmatprep.subr.mxu0 0.0
    %1124 = vmatpush1.msra.mxu0 0.0
    %1125 = vmatprep.subr.mxu0 0.0
    %1126 = vmatpush1.msra.mxu0 0.0
    %1127 = vmatprep.subr.mxu0 0.0
    %1128 = vmatpush1.msra.mxu0 0.0
    %1129 = vmatprep.subr.mxu0 0.0
    %1130 = vmatpush1.msra.mxu0 0.0
    %1131 = vmatprep.subr.mxu0 0.0
    %1132 = vmatpush1.msra.mxu0 0.0
    %1133 = vmatprep.subr.mxu0 0.0
    %1134 = vmatpush1.msra.mxu0 0.0
    %1135 = vmatprep.subr.mxu0 0.0
    %1136 = vmatpush1.msra.mxu0 0.0
    %1137 = vmatprep.subr.mxu0 0.0
    %1138 = vmatpush1.msra.mxu0 0.0
    %1139 = vmatprep.mubr.f32.mxu0 0.0
    %1140 = vmatmul.mubr.f32.gmra.mrb[0].mxu0 %v931
    %v1141 = vpop.f32.mrb[0].mxu0
    %v1142 = vadd.f32 %v1071, %v1141
    %v1143 = vpop.f32.mrb[0].mxu0
    %v1144 = vadd.f32 %v1073, %v1143
    %1145 = vdwg.mxu0
    %1146 = vmatprep.subr.mxu0 %v516
    %1147 = vmatpush1.msra.mxu0 %v515
    %1148 = vmatprep.subr.mxu0 %v521
    %1149 = vmatpush1.msra.mxu0 %v520
    %1150 = vmatprep.subr.mxu0 %v526
    %1151 = vmatpush1.msra.mxu0 %v525
    %1152 = vmatprep.subr.mxu0 %v531
    %1153 = vmatpush1.msra.mxu0 %v530
    %1154 = vmatprep.subr.mxu0 %v536
    %1155 = vmatpush1.msra.mxu0 %v535
    %1156 = vmatprep.subr.mxu0 %v541
    %1157 = vmatpush1.msra.mxu0 %v540
    %1158 = vmatprep.subr.mxu0 %v546
    %1159 = vmatpush1.msra.mxu0 %v545
    %1160 = vmatprep.subr.mxu0 %v551
    %1161 = vmatpush1.msra.mxu0 %v550
    %1162 = vmatprep.subr.mxu0 %v556
    %1163 = vmatpush1.msra.mxu0 %v555
    %1164 = vmatprep.subr.mxu0 %v561
    %1165 = vmatpush1.msra.mxu0 %v560
    %1166 = vmatprep.subr.mxu0 %v566
    %1167 = vmatpush1.msra.mxu0 %v565
    %1168 = vmatprep.subr.mxu0 %v571
    %1169 = vmatpush1.msra.mxu0 %v570
    %1170 = vmatprep.subr.mxu0 %v576
    %1171 = vmatpush1.msra.mxu0 %v575
    %1172 = vmatprep.subr.mxu0 %v581
    %1173 = vmatpush1.msra.mxu0 %v580
    %1174 = vmatprep.subr.mxu0 %v586
    %1175 = vmatpush1.msra.mxu0 %v585
    %1176 = vmatprep.subr.mxu0 %v591
    %1177 = vmatpush1.msra.mxu0 %v590
    %1178 = vmatprep.subr.mxu0 %v596
    %1179 = vmatpush1.msra.mxu0 %v595
    %1180 = vmatprep.subr.mxu0 %v601
    %1181 = vmatpush1.msra.mxu0 %v600
    %1182 = vmatprep.subr.mxu0 %v606
    %1183 = vmatpush1.msra.mxu0 %v605
    %1184 = vmatprep.subr.mxu0 %v611
    %1185 = vmatpush1.msra.mxu0 %v610
    %1186 = vmatprep.subr.mxu0 %v616
    %1187 = vmatpush1.msra.mxu0 %v615
    %1188 = vmatprep.subr.mxu0 %v621
    %1189 = vmatpush1.msra.mxu0 %v620
    %1190 = vmatprep.subr.mxu0 %v626
    %1191 = vmatpush1.msra.mxu0 %v625
    %1192 = vmatprep.subr.mxu0 %v631
    %1193 = vmatpush1.msra.mxu0 %v630
    %1194 = vmatprep.subr.mxu0 %v636
    %1195 = vmatpush1.msra.mxu0 %v635
    %1196 = vmatprep.subr.mxu0 %v641
    %1197 = vmatpush1.msra.mxu0 %v640
    %1198 = vmatprep.subr.mxu0 %v646
    %1199 = vmatpush1.msra.mxu0 %v645
    %1200 = vmatprep.subr.mxu0 %v651
    %1201 = vmatpush1.msra.mxu0 %v650
    %1202 = vmatprep.subr.mxu0 %v656
    %1203 = vmatpush1.msra.mxu0 %v655
    %1204 = vmatprep.subr.mxu0 %v661
    %1205 = vmatpush1.msra.mxu0 %v660
    %1206 = vmatprep.subr.mxu0 %v666
    %1207 = vmatpush1.msra.mxu0 %v665
    %1208 = vmatprep.subr.mxu0 %v671
    %1209 = vmatpush1.msra.mxu0 %v670
    %1210 = vmatprep.mubr.f32.mxu0 %v509
    %1211 = vmatmul.mubr.f32.gmra.mrb[0].mxu0 %v508
    %v1212 = vpop.f32.mrb[0].mxu0
    %v1213 = vadd.f32 %v916, %v1212
    %v1214 = vpop.f32.mrb[0].mxu0
    %v1215 = vadd.f32 %v920, %v1214
    %1216 = vdwg.mxu0
    %1217 = vmatprep.subr.mxu0 %v676
    %1218 = vmatpush1.msra.mxu0 %v675
    %1219 = vmatprep.subr.mxu0 %v681
    %1220 = vmatpush1.msra.mxu0 %v680
    %1221 = vmatprep.subr.mxu0 %v686
    %1222 = vmatpush1.msra.mxu0 %v685
    %1223 = vmatprep.subr.mxu0 %v691
    %1224 = vmatpush1.msra.mxu0 %v690
    %1225 = vmatprep.subr.mxu0 %v696
    %1226 = vmatpush1.msra.mxu0 %v695
    %1227 = vmatprep.subr.mxu0 %v701
    %1228 = vmatpush1.msra.mxu0 %v700
    %1229 = vmatprep.subr.mxu0 %v706
    %1230 = vmatpush1.msra.mxu0 %v705
    %1231 = vmatprep.subr.mxu0 %v711
    %1232 = vmatpush1.msra.mxu0 %v710
    %1233 = vmatprep.subr.mxu0 %v716
    %1234 = vmatpush1.msra.mxu0 %v715
    %1235 = vmatprep.subr.mxu0 %v721
    %1236 = vmatpush1.msra.mxu0 %v720
    %1237 = vmatprep.subr.mxu0 %v726
    %1238 = vmatpush1.msra.mxu0 %v725
    %1239 = vmatprep.subr.mxu0 %v731
    %1240 = vmatpush1.msra.mxu0 %v730
    %1241 = vmatprep.subr.mxu0 %v736
    %1242 = vmatpush1.msra.mxu0 %v735
    %1243 = vmatprep.subr.mxu0 %v741
    %1244 = vmatpush1.msra.mxu0 %v740
    %1245 = vmatprep.subr.mxu0 %v746
    %1246 = vmatpush1.msra.mxu0 %v745
    %1247 = vmatprep.subr.mxu0 %v751
    %1248 = vmatpush1.msra.mxu0 %v750
    %1249 = vmatprep.subr.mxu0 %v756
    %1250 = vmatpush1.msra.mxu0 %v755
    %1251 = vmatprep.subr.mxu0 %v761
    %1252 = vmatpush1.msra.mxu0 %v760
    %1253 = vmatprep.subr.mxu0 %v766
    %1254 = vmatpush1.msra.mxu0 %v765
    %1255 = vmatprep.subr.mxu0 %v771
    %1256 = vmatpush1.msra.mxu0 %v770
    %1257 = vmatprep.subr.mxu0 %v776
    %1258 = vmatpush1.msra.mxu0 %v775
    %1259 = vmatprep.subr.mxu0 %v781
    %1260 = vmatpush1.msra.mxu0 %v780
    %1261 = vmatprep.subr.mxu0 %v786
    %1262 = vmatpush1.msra.mxu0 %v785
    %1263 = vmatprep.subr.mxu0 %v791
    %1264 = vmatpush1.msra.mxu0 %v790
    %1265 = vmatprep.subr.mxu0 %v796
    %1266 = vmatpush1.msra.mxu0 %v795
    %1267 = vmatprep.subr.mxu0 %v801
    %1268 = vmatpush1.msra.mxu0 %v800
    %1269 = vmatprep.subr.mxu0 %v806
    %1270 = vmatpush1.msra.mxu0 %v805
    %1271 = vmatprep.subr.mxu0 %v811
    %1272 = vmatpush1.msra.mxu0 %v810
    %1273 = vmatprep.subr.mxu0 %v816
    %1274 = vmatpush1.msra.mxu0 %v815
    %1275 = vmatprep.subr.mxu0 %v821
    %1276 = vmatpush1.msra.mxu0 %v820
    %1277 = vmatprep.subr.mxu0 %v826
    %1278 = vmatpush1.msra.mxu0 %v825
    %1279 = vmatprep.subr.mxu0 %v831
    %1280 = vmatpush1.msra.mxu0 %v830
    %1281 = vmatprep.mubr.f32.mxu0 %v511
    %1282 = vmatmul.mubr.f32.gmra.mrb[0].mxu0 %v510
    %v1283 = vpop.f32.mrb[0].mxu0
    %v1284 = vadd.f32 %v1213, %v1283
    %v1285 = vpop.f32.mrb[0].mxu0
    %v1286 = vadd.f32 %v1215, %v1285
    %1287 = vdwg.mxu0
    %1288 = vmatprep.subr.mxu0 %v836
    %1289 = vmatpush1.msra.mxu0 %v835
    %1290 = vmatprep.subr.mxu0 %v841
    %1291 = vmatpush1.msra.mxu0 %v840
    %1292 = vmatprep.subr.mxu0 %v846
    %1293 = vmatpush1.msra.mxu0 %v845
    %1294 = vmatprep.subr.mxu0 %v851
    %1295 = vmatpush1.msra.mxu0 %v850
    %1296 = vmatprep.subr.mxu0 %v856
    %1297 = vmatpush1.msra.mxu0 %v855
    %1298 = vmatprep.subr.mxu0 %v861
    %1299 = vmatpush1.msra.mxu0 %v860
    %1300 = vmatprep.subr.mxu0 %v866
    %1301 = vmatpush1.msra.mxu0 %v865
    %1302 = vmatprep.subr.mxu0 %v871
    %1303 = vmatpush1.msra.mxu0 %v870
    %1304 = vmatprep.subr.mxu0 %v876
    %1305 = vmatpush1.msra.mxu0 %v875
    %1306 = vmatprep.subr.mxu0 %v881
    %1307 = vmatpush1.msra.mxu0 %v880
    %1308 = vmatprep.subr.mxu0 %v886
    %1309 = vmatpush1.msra.mxu0 %v885
    %1310 = vmatprep.subr.mxu0 %v891
    %1311 = vmatpush1.msra.mxu0 %v890
    %1312 = vmatprep.subr.mxu0 %v896
    %1313 = vmatpush1.msra.mxu0 %v895
    %1314 = vmatprep.subr.mxu0 %v901
    %1315 = vmatpush1.msra.mxu0 %v900
    %1316 = vmatprep.subr.mxu0 0.0
    %1317 = vmatpush1.msra.mxu0 0.0
    %1318 = vmatprep.subr.mxu0 0.0
    %1319 = vmatpush1.msra.mxu0 0.0
    %1320 = vmatprep.subr.mxu0 0.0
    %1321 = vmatpush1.msra.mxu0 0.0
    %1322 = vmatprep.subr.mxu0 0.0
    %1323 = vmatpush1.msra.mxu0 0.0
    %1324 = vmatprep.subr.mxu0 0.0
    %1325 = vmatpush1.msra.mxu0 0.0
    %1326 = vmatprep.subr.mxu0 0.0
    %1327 = vmatpush1.msra.mxu0 0.0
    %1328 = vmatprep.subr.mxu0 0.0
    %1329 = vmatpush1.msra.mxu0 0.0
    %1330 = vmatprep.subr.mxu0 0.0
    %1331 = vmatpush1.msra.mxu0 0.0
    %1332 = vmatprep.subr.mxu0 0.0
    %1333 = vmatpush1.msra.mxu0 0.0
    %1334 = vmatprep.subr.mxu0 0.0
    %1335 = vmatpush1.msra.mxu0 0.0
    %1336 = vmatprep.subr.mxu0 0.0
    %1337 = vmatpush1.msra.mxu0 0.0
    %1338 = vmatprep.subr.mxu0 0.0
    %1339 = vmatpush1.msra.mxu0 0.0
    %1340 = vmatprep.subr.mxu0 0.0
    %1341 = vmatpush1.msra.mxu0 0.0
    %1342 = vmatprep.subr.mxu0 0.0
    %1343 = vmatpush1.msra.mxu0 0.0
    %1344 = vmatprep.subr.mxu0 0.0
    %1345 = vmatpush1.msra.mxu0 0.0
    %1346 = vmatprep.subr.mxu0 0.0
    %1347 = vmatpush1.msra.mxu0 0.0
    %1348 = vmatprep.subr.mxu0 0.0
    %1349 = vmatpush1.msra.mxu0 0.0
    %1350 = vmatprep.subr.mxu0 0.0
    %1351 = vmatpush1.msra.mxu0 0.0
    %1352 = vmatprep.mubr.f32.mxu0 0.0
    %1353 = vmatmul.mubr.f32.gmra.mrb[0].mxu0 %v931
    %v1354 = vpop.f32.mrb[0].mxu0
    %v1355 = vadd.f32 %v1284, %v1354
    %v1356 = vpop.f32.mrb[0].mxu0
    %v1357 = vadd.f32 %v1286, %v1356
    %1358 = vdwg.mxu0
    %1359 = vmatprep.subr.mxu0 0.0
    %1360 = vmatpush1.msra.mxu0 %v517
    %1361 = vmatprep.subr.mxu0 0.0
    %1362 = vmatpush1.msra.mxu0 %v522
    %1363 = vmatprep.subr.mxu0 0.0
    %1364 = vmatpush1.msra.mxu0 %v527
    %1365 = vmatprep.subr.mxu0 0.0
    %1366 = vmatpush1.msra.mxu0 %v532
    %1367 = vmatprep.subr.mxu0 0.0
    %1368 = vmatpush1.msra.mxu0 %v537
    %1369 = vmatprep.subr.mxu0 0.0
    %1370 = vmatpush1.msra.mxu0 %v542
    %1371 = vmatprep.subr.mxu0 0.0
    %1372 = vmatpush1.msra.mxu0 %v547
    %1373 = vmatprep.subr.mxu0 0.0
    %1374 = vmatpush1.msra.mxu0 %v552
    %1375 = vmatprep.subr.mxu0 0.0
    %1376 = vmatpush1.msra.mxu0 %v557
    %1377 = vmatprep.subr.mxu0 0.0
    %1378 = vmatpush1.msra.mxu0 %v562
    %1379 = vmatprep.subr.mxu0 0.0
    %1380 = vmatpush1.msra.mxu0 %v567
    %1381 = vmatprep.subr.mxu0 0.0
    %1382 = vmatpush1.msra.mxu0 %v572
    %1383 = vmatprep.subr.mxu0 0.0
    %1384 = vmatpush1.msra.mxu0 %v577
    %1385 = vmatprep.subr.mxu0 0.0
    %1386 = vmatpush1.msra.mxu0 %v582
    %1387 = vmatprep.subr.mxu0 0.0
    %1388 = vmatpush1.msra.mxu0 %v587
    %1389 = vmatprep.subr.mxu0 0.0
    %1390 = vmatpush1.msra.mxu0 %v592
    %1391 = vmatprep.subr.mxu0 0.0
    %1392 = vmatpush1.msra.mxu0 %v597
    %1393 = vmatprep.subr.mxu0 0.0
    %1394 = vmatpush1.msra.mxu0 %v602
    %1395 = vmatprep.subr.mxu0 0.0
    %1396 = vmatpush1.msra.mxu0 %v607
    %1397 = vmatprep.subr.mxu0 0.0
    %1398 = vmatpush1.msra.mxu0 %v612
    %1399 = vmatprep.subr.mxu0 0.0
    %1400 = vmatpush1.msra.mxu0 %v617
    %1401 = vmatprep.subr.mxu0 0.0
    %1402 = vmatpush1.msra.mxu0 %v622
    %1403 = vmatprep.subr.mxu0 0.0
    %1404 = vmatpush1.msra.mxu0 %v627
    %1405 = vmatprep.subr.mxu0 0.0
    %1406 = vmatpush1.msra.mxu0 %v632
    %1407 = vmatprep.subr.mxu0 0.0
    %1408 = vmatpush1.msra.mxu0 %v637
    %1409 = vmatprep.subr.mxu0 0.0
    %1410 = vmatpush1.msra.mxu0 %v642
    %1411 = vmatprep.subr.mxu0 0.0
    %1412 = vmatpush1.msra.mxu0 %v647
    %1413 = vmatprep.subr.mxu0 0.0
    %1414 = vmatpush1.msra.mxu0 %v652
    %1415 = vmatprep.subr.mxu0 0.0
    %1416 = vmatpush1.msra.mxu0 %v657
    %1417 = vmatprep.subr.mxu0 0.0
    %1418 = vmatpush1.msra.mxu0 %v662
    %1419 = vmatprep.subr.mxu0 0.0
    %1420 = vmatpush1.msra.mxu0 %v667
    %1421 = vmatprep.subr.mxu0 0.0
    %1422 = vmatpush1.msra.mxu0 %v672
    %1423 = vmatprep.mubr.f32.mxu0 %v509
    %1424 = vmatmul.mubr.f32.gmra.mrb[0].mxu0 %v508
    %v1425 = vpop.f32.mrb[0].mxu0
    %v1426 = vadd.f32 %v924, %v1425
    %v1427 = vpop.f32.mrb[0].mxu0
    %1428 = vdwg.mxu0
    %1429 = vmatprep.subr.mxu0 0.0
    %1430 = vmatpush1.msra.mxu0 %v677
    %1431 = vmatprep.subr.mxu0 0.0
    %1432 = vmatpush1.msra.mxu0 %v682
    %1433 = vmatprep.subr.mxu0 0.0
    %1434 = vmatpush1.msra.mxu0 %v687
    %1435 = vmatprep.subr.mxu0 0.0
    %1436 = vmatpush1.msra.mxu0 %v692
    %1437 = vmatprep.subr.mxu0 0.0
    %1438 = vmatpush1.msra.mxu0 %v697
    %1439 = vmatprep.subr.mxu0 0.0
    %1440 = vmatpush1.msra.mxu0 %v702
    %1441 = vmatprep.subr.mxu0 0.0
    %1442 = vmatpush1.msra.mxu0 %v707
    %1443 = vmatprep.subr.mxu0 0.0
    %1444 = vmatpush1.msra.mxu0 %v712
    %1445 = vmatprep.subr.mxu0 0.0
    %1446 = vmatpush1.msra.mxu0 %v717
    %1447 = vmatprep.subr.mxu0 0.0
    %1448 = vmatpush1.msra.mxu0 %v722
    %1449 = vmatprep.subr.mxu0 0.0
    %1450 = vmatpush1.msra.mxu0 %v727
    %1451 = vmatprep.subr.mxu0 0.0
    %1452 = vmatpush1.msra.mxu0 %v732
    %1453 = vmatprep.subr.mxu0 0.0
    %1454 = vmatpush1.msra.mxu0 %v737
    %1455 = vmatprep.subr.mxu0 0.0
    %1456 = vmatpush1.msra.mxu0 %v742
    %1457 = vmatprep.subr.mxu0 0.0
    %1458 = vmatpush1.msra.mxu0 %v747
    %1459 = vmatprep.subr.mxu0 0.0
    %1460 = vmatpush1.msra.mxu0 %v752
    %1461 = vmatprep.subr.mxu0 0.0
    %1462 = vmatpush1.msra.mxu0 %v757
    %1463 = vmatprep.subr.mxu0 0.0
    %1464 = vmatpush1.msra.mxu0 %v762
    %1465 = vmatprep.subr.mxu0 0.0
    %1466 = vmatpush1.msra.mxu0 %v767
    %1467 = vmatprep.subr.mxu0 0.0
    %1468 = vmatpush1.msra.mxu0 %v772
    %1469 = vmatprep.subr.mxu0 0.0
    %1470 = vmatpush1.msra.mxu0 %v777
    %1471 = vmatprep.subr.mxu0 0.0
    %1472 = vmatpush1.msra.mxu0 %v782
    %1473 = vmatprep.subr.mxu0 0.0
    %1474 = vmatpush1.msra.mxu0 %v787
    %1475 = vmatprep.subr.mxu0 0.0
    %1476 = vmatpush1.msra.mxu0 %v792
    %1477 = vmatprep.subr.mxu0 0.0
    %1478 = vmatpush1.msra.mxu0 %v797
    %1479 = vmatprep.subr.mxu0 0.0
    %1480 = vmatpush1.msra.mxu0 %v802
    %1481 = vmatprep.subr.mxu0 0.0
    %1482 = vmatpush1.msra.mxu0 %v807
    %1483 = vmatprep.subr.mxu0 0.0
    %1484 = vmatpush1.msra.mxu0 %v812
    %1485 = vmatprep.subr.mxu0 0.0
    %1486 = vmatpush1.msra.mxu0 %v817
    %1487 = vmatprep.subr.mxu0 0.0
    %1488 = vmatpush1.msra.mxu0 %v822
    %1489 = vmatprep.subr.mxu0 0.0
    %1490 = vmatpush1.msra.mxu0 %v827
    %1491 = vmatprep.subr.mxu0 0.0
    %1492 = vmatpush1.msra.mxu0 %v832
    %1493 = vmatprep.mubr.f32.mxu0 %v511
    %1494 = vmatmul.mubr.f32.gmra.mrb[0].mxu0 %v510
    %v1495 = vpop.f32.mrb[0].mxu0
    %v1496 = vadd.f32 %v1426, %v1495
    %v1497 = vpop.f32.mrb[0].mxu0
    %1498 = vdwg.mxu0
    %1499 = vmatprep.subr.mxu0 0.0
    %1500 = vmatpush1.msra.mxu0 %v837
    %1501 = vmatprep.subr.mxu0 0.0
    %1502 = vmatpush1.msra.mxu0 %v842
    %1503 = vmatprep.subr.mxu0 0.0
    %1504 = vmatpush1.msra.mxu0 %v847
    %1505 = vmatprep.subr.mxu0 0.0
    %1506 = vmatpush1.msra.mxu0 %v852
    %1507 = vmatprep.subr.mxu0 0.0
    %1508 = vmatpush1.msra.mxu0 %v857
    %1509 = vmatprep.subr.mxu0 0.0
    %1510 = vmatpush1.msra.mxu0 %v862
    %1511 = vmatprep.subr.mxu0 0.0
    %1512 = vmatpush1.msra.mxu0 %v867
    %1513 = vmatprep.subr.mxu0 0.0
    %1514 = vmatpush1.msra.mxu0 %v872
    %1515 = vmatprep.subr.mxu0 0.0
    %1516 = vmatpush1.msra.mxu0 %v877
    %1517 = vmatprep.subr.mxu0 0.0
    %1518 = vmatpush1.msra.mxu0 %v882
    %1519 = vmatprep.subr.mxu0 0.0
    %1520 = vmatpush1.msra.mxu0 %v887
    %1521 = vmatprep.subr.mxu0 0.0
    %1522 = vmatpush1.msra.mxu0 %v892
    %1523 = vmatprep.subr.mxu0 0.0
    %1524 = vmatpush1.msra.mxu0 %v897
    %1525 = vmatprep.subr.mxu0 0.0
    %1526 = vmatpush1.msra.mxu0 %v902
    %1527 = vmatprep.subr.mxu0 0.0
    %1528 = vmatpush1.msra.mxu0 0.0
    %1529 = vmatprep.subr.mxu0 0.0
    %1530 = vmatpush1.msra.mxu0 0.0
    %1531 = vmatprep.subr.mxu0 0.0
    %1532 = vmatpush1.msra.mxu0 0.0
    %1533 = vmatprep.subr.mxu0 0.0
    %1534 = vmatpush1.msra.mxu0 0.0
    %1535 = vmatprep.subr.mxu0 0.0
    %1536 = vmatpush1.msra.mxu0 0.0
    %1537 = vmatprep.subr.mxu0 0.0
    %1538 = vmatpush1.msra.mxu0 0.0
    %1539 = vmatprep.subr.mxu0 0.0
    %1540 = vmatpush1.msra.mxu0 0.0
    %1541 = vmatprep.subr.mxu0 0.0
    %1542 = vmatpush1.msra.mxu0 0.0
    %1543 = vmatprep.subr.mxu0 0.0
    %1544 = vmatpush1.msra.mxu0 0.0
    %1545 = vmatprep.subr.mxu0 0.0
    %1546 = vmatpush1.msra.mxu0 0.0
    %1547 = vmatprep.subr.mxu0 0.0
    %1548 = vmatpush1.msra.mxu0 0.0
    %1549 = vmatprep.subr.mxu0 0.0
    %1550 = vmatpush1.msra.mxu0 0.0
    %1551 = vmatprep.subr.mxu0 0.0
    %1552 = vmatpush1.msra.mxu0 0.0
    %1553 = vmatprep.subr.mxu0 0.0
    %1554 = vmatpush1.msra.mxu0 0.0
    %1555 = vmatprep.subr.mxu0 0.0
    %1556 = vmatpush1.msra.mxu0 0.0
    %1557 = vmatprep.subr.mxu0 0.0
    %1558 = vmatpush1.msra.mxu0 0.0
    %1559 = vmatprep.subr.mxu0 0.0
    %1560 = vmatpush1.msra.mxu0 0.0
    %1561 = vmatprep.subr.mxu0 0.0
    %1562 = vmatpush1.msra.mxu0 0.0
    %1563 = vmatprep.mubr.f32.mxu0 0.0
    %1564 = vmatmul.mubr.f32.gmra.mrb[0].mxu0 %v931
    %v1565 = vpop.f32.mrb[0].mxu0
    %v1566 = vadd.f32 %v1496, %v1565
    %v1567 = vpop.f32.mrb[0].mxu0
    %1568 = vdwg.mxu0
    %v1569 = vmax.f32 %v1142, 0.0
    %v1570 = vmax.f32 %v1144, 0.0
    %v1571 = vmax.f32 %v1355, 0.0
    %v1572 = vmax.f32 %v1357, 0.0
    %v1573 = vmax.f32 %v1566, 0.0
    %1579 = vrot.lane.b32.xlu0 %v1569, 96
    %v1580 = vpop.permute.xlu0 %1579
    %1581 = vrot.lane.b32.xlu0 %v1570, 96
    %v1582 = vpop.permute.xlu0 %1581
    %1583 = vrot.lane.b32.xlu0 %v1571, 96
    %v1584 = vpop.permute.xlu0 %1583
    %1585 = vrot.lane.b32.xlu0 %v1572, 96
    %v1586 = vpop.permute.xlu0 %1585
    %1587 = vrot.lane.b32.xlu0 %v1573, 96
    %v1588 = vpop.permute.xlu0 %1587
    %v1589 = vsel %vm497, %v1580, %v1582
    %v1590 = vsel %vm497, %v1582, %v1584
    %v1591 = vsel %vm497, %v1584, %v1586
    %v1592 = vsel %vm497, %v1586, %v1588
    %v1598 = vmax.f32 %v1569, %v1589
    %v1599 = vmax.f32 %v1570, %v1590
    %v1600 = vmax.f32 %v1571, %v1591
    %v1601 = vmax.f32 %v1572, %v1592
    %v1602 = vmax.f32 %v1573, %v1588
    %1608 = vrot.lane.b32.xlu0 %v1598, 64
    %v1609 = vpop.permute.xlu0 %1608
    %1610 = vrot.lane.b32.xlu0 %v1599, 64
    %v1611 = vpop.permute.xlu0 %1610
    %1612 = vrot.lane.b32.xlu0 %v1600, 64
    %v1613 = vpop.permute.xlu0 %1612
    %1614 = vrot.lane.b32.xlu0 %v1601, 64
    %v1615 = vpop.permute.xlu0 %1614
    %1616 = vrot.lane.b32.xlu0 %v1602, 64
    %v1617 = vpop.permute.xlu0 %1616
    %vm1618 = vcmask 523264
    %v1619 = vsel %vm1618, %v1609, %v1611
    %v1620 = vsel %vm1618, %v1611, %v1613
    %v1621 = vsel %vm1618, %v1613, %v1615
    %v1622 = vsel %vm1618, %v1615, %v1617
    %v1628 = vmax.f32 %v1598, %v1619
    %v1629 = vmax.f32 %v1599, %v1620
    %v1630 = vmax.f32 %v1600, %v1621
    %v1631 = vmax.f32 %v1601, %v1622
    %v1632 = vmax.f32 %v1602, %v1617
    %v1633 = vld [vmem:[#allocation11] sm:$0xff]
    %v1634 = vld [vmem:[#allocation11 + $0x8] sm:$0xff]
    %v1635 = vld [vmem:[#allocation11 + $0x10] sm:$0xff]
    %v1636 = vld [vmem:[#allocation11 + $0x18] sm:$0xff]
    %v1637 = vld [vmem:[#allocation11 + $0x20] sm:$0xff]
    %v1638 = vld [vmem:[#allocation11 + $0x28] sm:$0xff]
    %v1639 = vld [vmem:[#allocation11 + $0x30] sm:$0xff]
    %v1640 = vld [vmem:[#allocation11 + $0x38] sm:$0xff]
    %v1641 = vld [vmem:[#allocation11 + $0x40] sm:$0xff]
    %v1642 = vld [vmem:[#allocation11 + $0x48] sm:$0xff]
    %v1643 = vld [vmem:[#allocation11 + $0x50] sm:$0xff]
    %v1644 = vld [vmem:[#allocation11 + $0x58] sm:$0xff]
    %v1645 = vld [vmem:[#allocation11 + $0x60] sm:$0xff]
    %v1646 = vld [vmem:[#allocation11 + $0x68] sm:$0xff]
    %v1647 = vld [vmem:[#allocation11 + $0x70] sm:$0xff]
    %v1648 = vld [vmem:[#allocation11 + $0x78] sm:$0xff]
    %v1649 = vld [vmem:[#allocation11 + $0x80] sm:$0xff]
    %v1650 = vld [vmem:[#allocation11 + $0x88] sm:$0xff]
    %v1651 = vld [vmem:[#allocation11 + $0x90] sm:$0xff]
    %v1652 = vld [vmem:[#allocation11 + $0x98] sm:$0xff]
    %v1653 = vld [vmem:[#allocation11 + $0xa0] sm:$0xff]
    %v1654 = vld [vmem:[#allocation11 + $0xa8] sm:$0xff]
    %v1655 = vld [vmem:[#allocation11 + $0xb0] sm:$0xff]
    %v1656 = vld [vmem:[#allocation11 + $0xb8] sm:$0xff]
    %v1657 = vld [vmem:[#allocation11 + $0xc0] sm:$0xff]
    %v1658 = vld [vmem:[#allocation11 + $0xc8] sm:$0xff]
    %v1659 = vld [vmem:[#allocation11 + $0xd0] sm:$0xff]
    %v1660 = vld [vmem:[#allocation11 + $0xd8] sm:$0xff]
    %v1661 = vld [vmem:[#allocation11 + $0xe0] sm:$0xff]
    %v1662 = vld [vmem:[#allocation11 + $0xe8] sm:$0xff]
    %v1663 = vld [vmem:[#allocation11 + $0xf0] sm:$0xff]
    %v1664 = vld [vmem:[#allocation11 + $0xf8] sm:$0xff]
    %v1665 = vld [vmem:[#allocation11 + $0x100] sm:$0xff]
    %v1666 = vld [vmem:[#allocation11 + $0x108] sm:$0xff]
    %v1667 = vld [vmem:[#allocation11 + $0x110] sm:$0xff]
    %v1668 = vld [vmem:[#allocation11 + $0x118] sm:$0xff]
    %v1669 = vld [vmem:[#allocation11 + $0x120] sm:$0xff]
    %v1670 = vld [vmem:[#allocation11 + $0x128] sm:$0xff]
    %v1671 = vld [vmem:[#allocation11 + $0x130] sm:$0xff]
    %v1672 = vld [vmem:[#allocation11 + $0x138] sm:$0xff]
    %v1673 = vld [vmem:[#allocation11 + $0x140] sm:$0xff]
    %v1674 = vld [vmem:[#allocation11 + $0x148] sm:$0xff]
    %v1675 = vld [vmem:[#allocation11 + $0x150] sm:$0xff]
    %v1676 = vld [vmem:[#allocation11 + $0x158] sm:$0xff]
    %v1677 = vld [vmem:[#allocation11 + $0x160] sm:$0xff]
    %v1678 = vld [vmem:[#allocation11 + $0x168] sm:$0xff]
    %v1679 = vld [vmem:[#allocation11 + $0x170] sm:$0xff]
    %v1680 = vld [vmem:[#allocation11 + $0x178] sm:$0xff]
    %v1681 = vld [vmem:[#allocation11 + $0x180] sm:$0xff]
    %v1682 = vld [vmem:[#allocation11 + $0x188] sm:$0xff]
    %v1683 = vld [vmem:[#allocation11 + $0x190] sm:$0xff]
    %v1684 = vld [vmem:[#allocation11 + $0x198] sm:$0xff]
    %v1685 = vld [vmem:[#allocation11 + $0x1a0] sm:$0xff]
    %v1686 = vld [vmem:[#allocation11 + $0x1a8] sm:$0xff]
    %v1687 = vld [vmem:[#allocation11 + $0x1b0] sm:$0xff]
    %v1688 = vld [vmem:[#allocation11 + $0x1b8] sm:$0xff]
    %v1689 = vld [vmem:[#allocation11 + $0x1c0] sm:$0xff]
    %v1690 = vld [vmem:[#allocation11 + $0x1c8] sm:$0xff]
    %v1691 = vld [vmem:[#allocation11 + $0x1d0] sm:$0xff]
    %v1692 = vld [vmem:[#allocation11 + $0x1d8] sm:$0xff]
    %v1693 = vld [vmem:[#allocation11 + $0x1e0] sm:$0xff]
    %v1694 = vld [vmem:[#allocation11 + $0x1e8] sm:$0xff]
    %v1695 = vld [vmem:[#allocation11 + $0x1f0] sm:$0xff]
    %v1696 = vld [vmem:[#allocation11 + $0x1f8] sm:$0xff]
    %v1697 = vld [vmem:[#allocation11 + $0x200] sm:$0xff]
    %v1698 = vld [vmem:[#allocation11 + $0x208] sm:$0xff]
    %v1699 = vld [vmem:[#allocation11 + $0x210] sm:$0xff]
    %v1700 = vld [vmem:[#allocation11 + $0x218] sm:$0xff]
    %v1701 = vld [vmem:[#allocation13] sm:$0x1]
    %v1703 = vlaneseq
    %v1704 = vshrl.u32 %v1703, 7
    %v1705 = vsub.s32 0, %v1704
    %v1706 = vrot.slane %v1701, %v1705
    %vm1708 = vcmask 261120
    %v1710 = vsel %vm1708, %v1632, 0
    %1712 = vmatprep.subr.mxu0 0.0
    %1713 = vmatpush1.msra.mxu0 %v1633
    %1714 = vmatprep.subr.mxu0 0.0
    %1715 = vmatpush1.msra.mxu0 %v1634
    %1716 = vmatprep.subr.mxu0 0.0
    %1717 = vmatpush1.msra.mxu0 %v1635
    %1718 = vmatprep.subr.mxu0 0.0
    %1719 = vmatpush1.msra.mxu0 %v1636
    %1720 = vmatprep.subr.mxu0 0.0
    %1721 = vmatpush1.msra.mxu0 %v1637
    %1722 = vmatprep.subr.mxu0 0.0
    %1723 = vmatpush1.msra.mxu0 %v1638
    %1724 = vmatprep.subr.mxu0 0.0
    %1725 = vmatpush1.msra.mxu0 %v1639
    %1726 = vmatprep.subr.mxu0 0.0
    %1727 = vmatpush1.msra.mxu0 %v1640
    %1728 = vmatprep.subr.mxu0 0.0
    %1729 = vmatpush1.msra.mxu0 %v1641
    %1730 = vmatprep.subr.mxu0 0.0
    %1731 = vmatpush1.msra.mxu0 %v1642
    %1732 = vmatprep.subr.mxu0 0.0
    %1733 = vmatpush1.msra.mxu0 %v1643
    %1734 = vmatprep.subr.mxu0 0.0
    %1735 = vmatpush1.msra.mxu0 %v1644
    %1736 = vmatprep.subr.mxu0 0.0
    %1737 = vmatpush1.msra.mxu0 %v1645
    %1738 = vmatprep.subr.mxu0 0.0
    %1739 = vmatpush1.msra.mxu0 %v1646
    %1740 = vmatprep.subr.mxu0 0.0
    %1741 = vmatpush1.msra.mxu0 %v1647
    %1742 = vmatprep.subr.mxu0 0.0
    %1743 = vmatpush1.msra.mxu0 %v1648
    %1744 = vmatprep.subr.mxu0 0.0
    %1745 = vmatpush1.msra.mxu0 %v1649
    %1746 = vmatprep.subr.mxu0 0.0
    %1747 = vmatpush1.msra.mxu0 %v1650
    %1748 = vmatprep.subr.mxu0 0.0
    %1749 = vmatpush1.msra.mxu0 %v1651
    %1750 = vmatprep.subr.mxu0 0.0
    %1751 = vmatpush1.msra.mxu0 %v1652
    %1752 = vmatprep.subr.mxu0 0.0
    %1753 = vmatpush1.msra.mxu0 %v1653
    %1754 = vmatprep.subr.mxu0 0.0
    %1755 = vmatpush1.msra.mxu0 %v1654
    %1756 = vmatprep.subr.mxu0 0.0
    %1757 = vmatpush1.msra.mxu0 %v1655
    %1758 = vmatprep.subr.mxu0 0.0
    %1759 = vmatpush1.msra.mxu0 %v1656
    %1760 = vmatprep.subr.mxu0 0.0
    %1761 = vmatpush1.msra.mxu0 %v1657
    %1762 = vmatprep.subr.mxu0 0.0
    %1763 = vmatpush1.msra.mxu0 %v1658
    %1764 = vmatprep.subr.mxu0 0.0
    %1765 = vmatpush1.msra.mxu0 %v1659
    %1766 = vmatprep.subr.mxu0 0.0
    %1767 = vmatpush1.msra.mxu0 %v1660
    %1768 = vmatprep.subr.mxu0 0.0
    %1769 = vmatpush1.msra.mxu0 %v1661
    %1770 = vmatprep.subr.mxu0 0.0
    %1771 = vmatpush1.msra.mxu0 %v1662
    %1772 = vmatprep.subr.mxu0 0.0
    %1773 = vmatpush1.msra.mxu0 %v1663
    %1774 = vmatprep.subr.mxu0 0.0
    %1775 = vmatpush1.msra.mxu0 %v1664
    %1776 = vmatprep.mubr.f32.mxu0 %v1629
    %1777 = vmatmul.mubr.f32.gmra.mrb[0].mxu0 %v1628
    %v1778 = vpop.f32.mrb[0].mxu0
    %v1779 = vadd.f32 %v1706, %v1778
    %v1780 = vpop.f32.mrb[0].mxu0
    %1781 = vdwg.mxu0
    %1782 = vmatprep.subr.mxu0 0.0
    %1783 = vmatpush1.msra.mxu0 %v1665
    %1784 = vmatprep.subr.mxu0 0.0
    %1785 = vmatpush1.msra.mxu0 %v1666
    %1786 = vmatprep.subr.mxu0 0.0
    %1787 = vmatpush1.msra.mxu0 %v1667
    %1788 = vmatprep.subr.mxu0 0.0
    %1789 = vmatpush1.msra.mxu0 %v1668
    %1790 = vmatprep.subr.mxu0 0.0
    %1791 = vmatpush1.msra.mxu0 %v1669
    %1792 = vmatprep.subr.mxu0 0.0
    %1793 = vmatpush1.msra.mxu0 %v1670
    %1794 = vmatprep.subr.mxu0 0.0
    %1795 = vmatpush1.msra.mxu0 %v1671
    %1796 = vmatprep.subr.mxu0 0.0
    %1797 = vmatpush1.msra.mxu0 %v1672
    %1798 = vmatprep.subr.mxu0 0.0
    %1799 = vmatpush1.msra.mxu0 %v1673
    %1800 = vmatprep.subr.mxu0 0.0
    %1801 = vmatpush1.msra.mxu0 %v1674
    %1802 = vmatprep.subr.mxu0 0.0
    %1803 = vmatpush1.msra.mxu0 %v1675
    %1804 = vmatprep.subr.mxu0 0.0
    %1805 = vmatpush1.msra.mxu0 %v1676
    %1806 = vmatprep.subr.mxu0 0.0
    %1807 = vmatpush1.msra.mxu0 %v1677
    %1808 = vmatprep.subr.mxu0 0.0
    %1809 = vmatpush1.msra.mxu0 %v1678
    %1810 = vmatprep.subr.mxu0 0.0
    %1811 = vmatpush1.msra.mxu0 %v1679
    %1812 = vmatprep.subr.mxu0 0.0
    %1813 = vmatpush1.msra.mxu0 %v1680
    %1814 = vmatprep.subr.mxu0 0.0
    %1815 = vmatpush1.msra.mxu0 %v1681
    %1816 = vmatprep.subr.mxu0 0.0
    %1817 = vmatpush1.msra.mxu0 %v1682
    %1818 = vmatprep.subr.mxu0 0.0
    %1819 = vmatpush1.msra.mxu0 %v1683
    %1820 = vmatprep.subr.mxu0 0.0
    %1821 = vmatpush1.msra.mxu0 %v1684
    %1822 = vmatprep.subr.mxu0 0.0
    %1823 = vmatpush1.msra.mxu0 %v1685
    %1824 = vmatprep.subr.mxu0 0.0
    %1825 = vmatpush1.msra.mxu0 %v1686
    %1826 = vmatprep.subr.mxu0 0.0
    %1827 = vmatpush1.msra.mxu0 %v1687
    %1828 = vmatprep.subr.mxu0 0.0
    %1829 = vmatpush1.msra.mxu0 %v1688
    %1830 = vmatprep.subr.mxu0 0.0
    %1831 = vmatpush1.msra.mxu0 %v1689
    %1832 = vmatprep.subr.mxu0 0.0
    %1833 = vmatpush1.msra.mxu0 %v1690
    %1834 = vmatprep.subr.mxu0 0.0
    %1835 = vmatpush1.msra.mxu0 %v1691
    %1836 = vmatprep.subr.mxu0 0.0
    %1837 = vmatpush1.msra.mxu0 %v1692
    %1838 = vmatprep.subr.mxu0 0.0
    %1839 = vmatpush1.msra.mxu0 %v1693
    %1840 = vmatprep.subr.mxu0 0.0
    %1841 = vmatpush1.msra.mxu0 %v1694
    %1842 = vmatprep.subr.mxu0 0.0
    %1843 = vmatpush1.msra.mxu0 %v1695
    %1844 = vmatprep.subr.mxu0 0.0
    %1845 = vmatpush1.msra.mxu0 %v1696
    %1846 = vmatprep.mubr.f32.mxu0 %v1631
    %1847 = vmatmul.mubr.f32.gmra.mrb[0].mxu0 %v1630
    %v1848 = vpop.f32.mrb[0].mxu0
    %v1849 = vadd.f32 %v1779, %v1848
    %v1850 = vpop.f32.mrb[0].mxu0
    %1851 = vdwg.mxu0
    %1852 = vmatprep.subr.mxu0 0.0
    %1853 = vmatpush1.msra.mxu0 %v1697
    %1854 = vmatprep.subr.mxu0 0.0
    %1855 = vmatpush1.msra.mxu0 %v1698
    %1856 = vmatprep.subr.mxu0 0.0
    %1857 = vmatpush1.msra.mxu0 %v1699
    %1858 = vmatprep.subr.mxu0 0.0
    %1859 = vmatpush1.msra.mxu0 %v1700
    %1860 = vmatprep.subr.mxu0 0.0
    %1861 = vmatpush1.msra.mxu0 0.0
    %1862 = vmatprep.subr.mxu0 0.0
    %1863 = vmatpush1.msra.mxu0 0.0
    %1864 = vmatprep.subr.mxu0 0.0
    %1865 = vmatpush1.msra.mxu0 0.0
    %1866 = vmatprep.subr.mxu0 0.0
    %1867 = vmatpush1.msra.mxu0 0.0
    %1868 = vmatprep.subr.mxu0 0.0
    %1869 = vmatpush1.msra.mxu0 0.0
    %1870 = vmatprep.subr.mxu0 0.0
    %1871 = vmatpush1.msra.mxu0 0.0
    %1872 = vmatprep.subr.mxu0 0.0
    %1873 = vmatpush1.msra.mxu0 0.0
    %1874 = vmatprep.subr.mxu0 0.0
    %1875 = vmatpush1.msra.mxu0 0.0
    %1876 = vmatprep.subr.mxu0 0.0
    %1877 = vmatpush1.msra.mxu0 0.0
    %1878 = vmatprep.subr.mxu0 0.0
    %1879 = vmatpush1.msra.mxu0 0.0
    %1880 = vmatprep.subr.mxu0 0.0
    %1881 = vmatpush1.msra.mxu0 0.0
    %1882 = vmatprep.subr.mxu0 0.0
    %1883 = vmatpush1.msra.mxu0 0.0
    %1884 = vmatprep.subr.mxu0 0.0
    %1885 = vmatpush1.msra.mxu0 0.0
    %1886 = vmatprep.subr.mxu0 0.0
    %1887 = vmatpush1.msra.mxu0 0.0
    %1888 = vmatprep.subr.mxu0 0.0
    %1889 = vmatpush1.msra.mxu0 0.0
    %1890 = vmatprep.subr.mxu0 0.0
    %1891 = vmatpush1.msra.mxu0 0.0
    %1892 = vmatprep.subr.mxu0 0.0
    %1893 = vmatpush1.msra.mxu0 0.0
    %1894 = vmatprep.subr.mxu0 0.0
    %1895 = vmatpush1.msra.mxu0 0.0
    %1896 = vmatprep.subr.mxu0 0.0
    %1897 = vmatpush1.msra.mxu0 0.0
    %1898 = vmatprep.subr.mxu0 0.0
    %1899 = vmatpush1.msra.mxu0 0.0
    %1900 = vmatprep.subr.mxu0 0.0
    %1901 = vmatpush1.msra.mxu0 0.0
    %1902 = vmatprep.subr.mxu0 0.0
    %1903 = vmatpush1.msra.mxu0 0.0
    %1904 = vmatprep.subr.mxu0 0.0
    %1905 = vmatpush1.msra.mxu0 0.0
    %1906 = vmatprep.subr.mxu0 0.0
    %1907 = vmatpush1.msra.mxu0 0.0
    %1908 = vmatprep.subr.mxu0 0.0
    %1909 = vmatpush1.msra.mxu0 0.0
    %1910 = vmatprep.subr.mxu0 0.0
    %1911 = vmatpush1.msra.mxu0 0.0
    %1912 = vmatprep.subr.mxu0 0.0
    %1913 = vmatpush1.msra.mxu0 0.0
    %1914 = vmatprep.subr.mxu0 0.0
    %1915 = vmatpush1.msra.mxu0 0.0
    %1916 = vmatprep.mubr.f32.mxu0 0.0
    %1917 = vmatmul.mubr.f32.gmra.mrb[0].mxu0 %v1710
    %v1918 = vpop.f32.mrb[0].mxu0
    %v1919 = vadd.f32 %v1849, %v1918
    %v1920 = vpop.f32.mrb[0].mxu0
    %1921 = vdwg.mxu0
    %v1922 = vmax.f32 %v1919, 0.0
    %v1923 = vld [vmem:[%s7] sm:$0xff]
    %v1924 = vld [vmem:[%s7 + $0x8] sm:$0xff]
    %v1925 = vld [vmem:[%s7 + $0x10] sm:$0xff]
    %v1926 = vld [vmem:[%s7 + $0x18] sm:$0xff]
    %v1927 = vld [vmem:[%s7 + $0x20] sm:$0xff]
    %v1928 = vld [vmem:[%s7 + $0x28] sm:$0xff]
    %v1929 = vld [vmem:[%s7 + $0x30] sm:$0xff]
    %v1930 = vld [vmem:[%s7 + $0x38] sm:$0xff]
    %v1931 = vld [vmem:[%s7 + $0x40] sm:$0xff]
    %v1932 = vld [vmem:[%s7 + $0x48] sm:$0xff]
    %v1933 = vld [vmem:[%s7 + $0x50] sm:$0xff]
    %v1934 = vld [vmem:[%s7 + $0x58] sm:$0xff]
    %v1935 = vld [vmem:[%s7 + $0x60] sm:$0xff]
    %v1936 = vld [vmem:[%s7 + $0x68] sm:$0xff]
    %v1937 = vld [vmem:[%s7 + $0x70] sm:$0xff]
    %v1938 = vld [vmem:[%s7 + $0x78] sm:$0xff]
    %v1939 = vld [vmem:[#allocation14] sm:$0x1]
    %v1941 = vlaneseq
    %v1942 = vshrl.u32 %v1941, 7
    %v1943 = vsub.s32 0, %v1942
    %v1944 = vrot.slane %v1939, %v1943
    %1946 = vmatprep.subr.mxu0 0.0
    %1947 = vmatpush1.msra.mxu0 %v1923
    %1948 = vmatprep.subr.mxu0 0.0
    %1949 = vmatpush1.msra.mxu0 %v1924
    %1950 = vmatprep.subr.mxu0 0.0
    %1951 = vmatpush1.msra.mxu0 %v1925
    %1952 = vmatprep.subr.mxu0 0.0
    %1953 = vmatpush1.msra.mxu0 %v1926
    %1954 = vmatprep.subr.mxu0 0.0
    %1955 = vmatpush1.msra.mxu0 %v1927
    %1956 = vmatprep.subr.mxu0 0.0
    %1957 = vmatpush1.msra.mxu0 %v1928
    %1958 = vmatprep.subr.mxu0 0.0
    %1959 = vmatpush1.msra.mxu0 %v1929
    %1960 = vmatprep.subr.mxu0 0.0
    %1961 = vmatpush1.msra.mxu0 %v1930
    %1962 = vmatprep.subr.mxu0 0.0
    %1963 = vmatpush1.msra.mxu0 %v1931
    %1964 = vmatprep.subr.mxu0 0.0
    %1965 = vmatpush1.msra.mxu0 %v1932
    %1966 = vmatprep.subr.mxu0 0.0
    %1967 = vmatpush1.msra.mxu0 %v1933
    %1968 = vmatprep.subr.mxu0 0.0
    %1969 = vmatpush1.msra.mxu0 %v1934
    %1970 = vmatprep.subr.mxu0 0.0
    %1971 = vmatpush1.msra.mxu0 %v1935
    %1972 = vmatprep.subr.mxu0 0.0
    %1973 = vmatpush1.msra.mxu0 %v1936
    %1974 = vmatprep.subr.mxu0 0.0
    %1975 = vmatpush1.msra.mxu0 %v1937
    %1976 = vmatprep.subr.mxu0 0.0
    %1977 = vmatpush1.msra.mxu0 %v1938
    %1978 = vmatprep.subr.mxu0 0.0
    %1979 = vmatpush1.msra.mxu0 0.0
    %1980 = vmatprep.subr.mxu0 0.0
    %1981 = vmatpush1.msra.mxu0 0.0
    %1982 = vmatprep.subr.mxu0 0.0
    %1983 = vmatpush1.msra.mxu0 0.0
    %1984 = vmatprep.subr.mxu0 0.0
    %1985 = vmatpush1.msra.mxu0 0.0
    %1986 = vmatprep.subr.mxu0 0.0
    %1987 = vmatpush1.msra.mxu0 0.0
    %1988 = vmatprep.subr.mxu0 0.0
    %1989 = vmatpush1.msra.mxu0 0.0
    %1990 = vmatprep.subr.mxu0 0.0
    %1991 = vmatpush1.msra.mxu0 0.0
    %1992 = vmatprep.subr.mxu0 0.0
    %1993 = vmatpush1.msra.mxu0 0.0
    %1994 = vmatprep.subr.mxu0 0.0
    %1995 = vmatpush1.msra.mxu0 0.0
    %1996 = vmatprep.subr.mxu0 0.0
    %1997 = vmatpush1.msra.mxu0 0.0
    %1998 = vmatprep.subr.mxu0 0.0
    %1999 = vmatpush1.msra.mxu0 0.0
    %2000 = vmatprep.subr.mxu0 0.0
    %2001 = vmatpush1.msra.mxu0 0.0
    %2002 = vmatprep.subr.mxu0 0.0
    %2003 = vmatpush1.msra.mxu0 0.0
    %2004 = vmatprep.subr.mxu0 0.0
    %2005 = vmatpush1.msra.mxu0 0.0
    %2006 = vmatprep.subr.mxu0 0.0
    %2007 = vmatpush1.msra.mxu0 0.0
    %2008 = vmatprep.subr.mxu0 0.0
    %2009 = vmatpush1.msra.mxu0 0.0
    %2010 = vmatprep.mubr.f32.mxu0 0.0
    %2011 = vmatmul.mubr.f32.gmra.mrb[0].mxu0 %v1922
    %v2012 = vpop.f32.mrb[0].mxu0
    %v2013 = vadd.f32 %v1944, %v2012
    %v2014 = vpop.f32.mrb[0].mxu0
    %2015 = vdwg.mxu0
    %v2016 = vsub.f32 0.0, %v2013
    %v2017 = vmul.f32 %v2016, 1.442695
    %v2018 = vpow.pop %v2017
    %v2019 = vadd.f32 %v2018, 1.0
    %v2020 = vrcp.pop %v2019
    %v2021 = vmul.f32 1.0, %v2020
    %vm2022 = vcmask 9216
    %2023 = vst.msk [vmem:[#allocation16] sm:$0x3] %vm2022, %v2021
    // Predicated region
    $region70: #{tpu_custom_call.1} parent=1 // pred_check
      _
    $region71: #{tpu_custom_call.1} parent=1 // pred_check_branch
      %2025 = sbr.rel (0) target = $region73
    $region72: #{tpu_custom_call.1} parent=1 // pred_region
      %s2027 = ssub.s32 32, 32
      %2028 = vsyncadd [#allocation4], %s2027
      %s2030 = sshll.u32 [#allocation16], 4
      %s2031 = int_to_ptr.vmem [resolvable:$true] %s2030
      %2033 = dma.vmem_to_hbm [thread:$0]  %s2031, 32, %s9, [#allocation4]
    $region73: #{tpu_custom_call.1} parent=1 // pred_fallthru
      _
    // Predicated region
    $region74: #{tpu_custom_call.1} parent=1 // pred_check
      _
    $region75: #{tpu_custom_call.1} parent=1 // pred_check_branch
      %2035 = sbr.rel (0) target = $region77
    $region76: #{tpu_custom_call.1} parent=1 // pred_region
      %2036 = dma.done [#allocation4], 32
    $region77: #{tpu_custom_call.1} parent=1 // pred_fallthru
      _
    %2037 = vsyncpa [#allocation3], 1
    %2038 = vsyncpa [#allocation6], 1
    %2039 = vsyncpa [#allocation9], 1
    %2040 = vsyncpa [#allocation12], 1
    %2041 = vsyncpa [#allocation15], 1
    %2042 = vsyncpa [#allocation4], 1

</llo_original>
